<compile_context>
chip_gen: v5e
topology: v5e:2x2
jax: 0.10.0
libtpu: 0.0.40
codegen_flags: <defaults>
</compile_context>

<pallas_src>
from functools import partial

import numpy as np

import jax
import jax.numpy as jnp
from jax import lax
from jax.experimental import pallas as pl
from jax.experimental.pallas import tpu as pltpu


# ----------------------------- in-kernel helpers -----------------------------


def _leaky(v):
    return jnp.where(v >= 0.0, v, 0.2 * v)


def _group_sum(v, wo, c):
    """v: (1, wo*c) with lanes ordered (w, channel).  Returns per-channel sums over the
    wo lane-groups, broadcast back to every (w, channel) lane, via log2(wo) circular
    lane rolls (XLU) + adds."""
    assert wo & (wo - 1) == 0, "wo must be a power of two"
    k = 1
    while k < wo:
        v = v + pltpu.roll(v, shift=k * c, axis=1)
        k *= 2
    return v


def _bn_train(y, gamma, beta, *, wo, c):
    """Training-mode BatchNorm on y (M, wo*c) f32; lanes ordered (w, channel).

    Per-channel statistics over (rows, w) = row mean/var + roll-add group reduction.
    """
    inv_wo = 1.0 / wo
    row_mean = jnp.mean(y, axis=0, keepdims=True)            # (1, wo*c)
    mean = _group_sum(row_mean, wo, c) * inv_wo               # per-channel, lane-bcast
    cen = y - mean
    row_var = jnp.mean(cen * cen, axis=0, keepdims=True)
    var = _group_sum(row_var, wo, c) * inv_wo
    return cen * lax.rsqrt(var + 1e-5) * gamma + beta


def _store_padded(pad_ref, act):
    """Write activation (Hin, NB, WC) into rows [2:2+Hin] of the H-padded VMEM scratch
    (Hp=Hin+4, NB, WC) and zero the 2+2 boundary rows (W padding lives in the
    block-Toeplitz weights)."""
    hin = act.shape[0]
    zr = jnp.zeros((2,) + tuple(act.shape[1:]), act.dtype)
    pad_ref[0:2, :, :] = zr
    pad_ref[2:2 + hin, :, :] = act
    pad_ref[2 + hin:4 + hin, :, :] = zr


def _conv_from_padded(pad_ref, w_ref):
    """5x5 / stride-2 / pad-2 conv of both packed paths.

    pad_ref: (Hp, NB, Win*Cin) bf16 H-padded activation scratch.  The W taps / stride /
    padding are baked into w_ref (block-Toeplitz, (5*Win*Cin, Wo*Cout) bf16); the 5 H
    taps are built via leading-axis parity reshapes + static slices (no strided loads).
    Returns ((Ho*NB, Wo*Cout) f32, Ho).
    """
    hp, nb, wc = pad_ref.shape
    ho = (hp - 4) // 2
    ap = pad_ref[...]                                   # (Hp, NB, WC) bf16
    a4 = ap.reshape(hp // 2, 2, nb, wc)                 # split padded H by parity
    taps = []
    for kh in range(5):
        off = kh // 2
        taps.append(a4[off:off + ho, kh % 2])           # (Ho, NB, WC)
    p = jnp.concatenate(taps, axis=-1)                  # (Ho, NB, 5*WC)
    y = jnp.dot(p.reshape(ho * nb, 5 * wc), w_ref[...],
                preferred_element_type=jnp.float32)     # (Ho*NB, Wo*Cout)
    return y, ho


def _disc_kernel(a0_ref,
                 w0_ref, b0_ref,
                 w1_ref, b1_ref, g1_ref, be1_ref,
                 w2_ref, b2_ref, g2_ref, be2_ref,
                 wh_ref, bh_ref,
                 out_ref,
                 pad0_ref, pad1_ref, pad2_ref):
    nb = a0_ref.shape[1]

    # ---- layer 0 (torch convs[-1] of both paths): conv + bias + LeakyReLU ----
    _store_padded(pad0_ref, a0_ref[...])                     # input already bf16
    y, ho = _conv_from_padded(pad0_ref, w0_ref)              # (16*NB, 128) f32
    y = _leaky(y + b0_ref[...])

    # ---- layer 1: conv + bias + BatchNorm(train) + LeakyReLU ----
    _store_padded(pad1_ref, y.astype(jnp.bfloat16).reshape(ho, nb, y.shape[-1]))
    y, ho = _conv_from_padded(pad1_ref, w1_ref)              # (8*NB, 128) f32
    y = _leaky(_bn_train(y + b1_ref[...], g1_ref[...], be1_ref[...],
                         wo=ho, c=y.shape[-1] // ho))

    # ---- layer 2: conv + bias + BatchNorm(train) + LeakyReLU ----
    _store_padded(pad2_ref, y.astype(jnp.bfloat16).reshape(ho, nb, y.shape[-1]))
    y, ho = _conv_from_padded(pad2_ref, w2_ref)              # (4*NB, 128) f32
    y = _leaky(_bn_train(y + b2_ref[...], g2_ref[...], be2_ref[...],
                         wo=ho, c=y.shape[-1] // ho))
    y = y.astype(jnp.bfloat16)
    # y: (4*NB, 128), rows (h, n), lanes (w, channel); x-path channels first.

    # ---- fused head: one (NB, 512) x (512, 1) matmul (fc_c + concat + fc folded) ----
    flat = jnp.concatenate([y[h * nb:(h + 1) * nb, :] for h in range(ho)], axis=-1)
    logit = jnp.dot(flat, wh_ref[...],
                    preferred_element_type=jnp.float32) + bh_ref[...]
    out_ref[...] = jax.nn.sigmoid(logit)


# ------------------------------- forward wrapper ------------------------------


@partial(jax.jit, static_argnames=("batch_tile",))
def discriminator_forward(arrs, x, condi_x, batch_tile=None):
    """x, condi_x: NCHW (N, 1, 32, 32) f32.  Returns (N, 1) sigmoid scores.

    batch_tile: samples per grid step.  Default (None) = whole batch in one step, which
    is required for exact PyTorch training-mode BatchNorm statistics; smaller tiles
    compute per-tile BN statistics (documented deviation) but keep weights VMEM-resident
    across grid steps and shard tiles across cores.
    """
    n, _, h, w = x.shape
    nb = n if batch_tile is None else batch_tile
    assert n % nb == 0 and (nb == n or nb % 8 == 0)

    # (N,1,H,W) x2 -> (H, N, W*2), lanes ordered (w, channel), emitted in bf16.
    imgs = jnp.stack([x[:, 0], condi_x[:, 0]], axis=-1)          # (N, H, W, 2)
    a0 = jnp.transpose(imgs, (1, 0, 2, 3)).reshape(h, n, 2 * w).astype(jnp.bfloat16)

    weight_names = ("w0", "b0", "w1", "b1", "g1", "be1",
                    "w2", "b2", "g2", "be2", "wh", "bh")
    weights = [arrs[k] for k in weight_names]

    const2d = lambda i: (0, 0)                       # weights: resident in VMEM
    in_specs = ([pl.BlockSpec((h, nb, 2 * w), lambda i: (0, i, 0))]
                + [pl.BlockSpec(tuple(wt.shape), const2d) for wt in weights])
    out_specs = pl.BlockSpec((nb, 1), lambda i: (i, 0))

    # Advisory cost estimate (whole call).
    flops = 2 * n * ((h // 2) * (5 * 2 * w) * 128
                     + (h // 4) * (5 * 128) * 128
                     + (h // 8) * (5 * 128) * 128
                     + 512)
    bytes_acc = (int(a0.size) * a0.dtype.itemsize
                 + sum(int(wt.size) * wt.dtype.itemsize for wt in weights)
                 + n * 4)

    grid_spec = pltpu.PrefetchScalarGridSpec(
        num_scalar_prefetch=0,
        grid=(n // nb,),
        in_specs=in_specs,
        out_specs=out_specs,
        scratch_shapes=[
            pltpu.VMEM((h + 4, nb, 2 * w), jnp.bfloat16),        # padded layer-0 input
            pltpu.VMEM((h // 2 + 4, nb, 128), jnp.bfloat16),     # padded layer-1 input
            pltpu.VMEM((h // 4 + 4, nb, 128), jnp.bfloat16),     # padded layer-2 input
        ],
    )

    return pl.pallas_call(
        _disc_kernel,
        out_shape=jax.ShapeDtypeStruct((n, 1), jnp.float32),
        grid_spec=grid_spec,
        compiler_params=pltpu.CompilerParams(
            dimension_semantics=("parallel",)),
        cost_estimate=pl.CostEstimate(flops=int(flops),
                                      transcendentals=int(n + 256),
                                      bytes_accessed=int(bytes_acc)),
    )(a0, *weights)


# ------------------------- parameters (torch layouts) -------------------------


def _path_conv_sizes(featmap_dim, n_channel, n_layer):
    sizes = []
    for layer in range(n_layer):
        cin = n_channel if layer == n_layer - 1 else featmap_dim // (2 ** (layer + 1))
        cout = featmap_dim // (2 ** layer)
        sizes.append((cin, cout))
    return sizes


def init_torch_params(key, featmap_dim=16, condi_featmap_dim=16, n_channel=1,
                      n_layer=3, n_condition=8):
    """Random parameters in PyTorch layouts (numpy), used for packing and reference."""
    ks = iter(jax.random.split(key, 64))

    def conv(cin, cout):
        w = 0.05 * jax.random.normal(next(ks), (cout, cin, 5, 5), jnp.float32)
        b = 0.01 * jax.random.normal(next(ks), (cout,), jnp.float32)
        return np.asarray(w), np.asarray(b)

    def bn(c):
        g = 1.0 + 0.1 * jax.random.normal(next(ks), (c,), jnp.float32)
        be = 0.1 * jax.random.normal(next(ks), (c,), jnp.float32)
        return np.asarray(g), np.asarray(be)

    def path(fdim):
        convs, bns = [], []
        for layer, (cin, cout) in enumerate(_path_conv_sizes(fdim, n_channel, n_layer)):
            convs.append(conv(cin, cout))
            if layer != n_layer - 1:
                bns.append(bn(cout))
        return convs, bns

    convs, BNs = path(featmap_dim)
    convs_c, BNs_c = path(condi_featmap_dim)

    fc_c_w = np.asarray(0.05 * jax.random.normal(
        next(ks), (n_condition, condi_featmap_dim * 16), jnp.float32))
    fc_c_b = np.asarray(0.01 * jax.random.normal(next(ks), (n_condition,), jnp.float32))
    fc_w = np.asarray(0.05 * jax.random.normal(
        next(ks), (1, featmap_dim * 16 + n_condition), jnp.float32))
    fc_b = np.asarray(0.01 * jax.random.normal(next(ks), (1,), jnp.float32))

    return dict(n_layer=n_layer, featmap_dim=featmap_dim,
                condi_featmap_dim=condi_featmap_dim, n_condition=n_condition,
                convs=convs, BNs=BNs, convs_condi=convs_c, BNs_condi=BNs_c,
                fc_c_w=fc_c_w, fc_c_b=fc_c_b, fc_w=fc_w, fc_b=fc_b)


# ----------------------- pack params into kernel layouts ----------------------


def _toeplitz_conv_weight(w_comb, win):
    """(Cout,Cin,5,5) torch conv weight -> (5*Win*Cin, (Win//2)*Cout) matrix that
    applies the 5x5 / stride-2 / pad-2 conv along W to rows with lanes (w, cin)."""
    cout, cin, _, _ = w_comb.shape
    wo = win // 2
    W = np.zeros((5, win, cin, wo, cout), np.float32)
    for kh in range(5):
        for j in range(wo):
            for kw in range(5):
                wcol = 2 * j + kw - 2            # padded col minus the pad offset
                if 0 <= wcol < win:
                    W[kh, wcol, :, j, :] = w_comb[:, :, kh, kw].T
    return W.reshape(5 * win * cin, wo * cout)


def pack_params(tp, img_hw=32):
    nl = tp["n_layer"]
    assert nl == 3, "packing assumes the default 3-layer DCGAN discriminator"
    fin = img_hw // (2 ** nl)
    assert fin == 4, "input spatial size must reach the hard-coded 4x4 flatten"

    arrs = {}
    win = img_hw
    couts = []
    for layer in range(nl):                   # order in which forward applies them
        idx = nl - 1 - layer                  # torch ModuleList index
        wx, bx = tp["convs"][idx]
        wc, bc = tp["convs_condi"][idx]
        cox, cix = wx.shape[:2]
        coc, cic = wc.shape[:2]
        # block-diagonal weight over the two packed paths (x channels first)
        w_comb = np.zeros((cox + coc, cix + cic, 5, 5), np.float32)
        w_comb[:cox, :cix] = wx
        w_comb[cox:, cix:] = wc
        b_comb = np.concatenate([bx, bc])
        wo = win // 2
        arrs[f"w{layer}"] = jnp.asarray(_toeplitz_conv_weight(w_comb, win),
                                        jnp.bfloat16)
        arrs[f"b{layer}"] = jnp.asarray(np.tile(b_comb, wo)[None, :], jnp.float32)
        if layer != 0:
            gx, bex = tp["BNs"][idx]
            gc, bec = tp["BNs_condi"][idx]
            arrs[f"g{layer}"] = jnp.asarray(
                np.tile(np.concatenate([gx, gc]), wo)[None, :], jnp.float32)
            arrs[f"be{layer}"] = jnp.asarray(
                np.tile(np.concatenate([bex, bec]), wo)[None, :], jnp.float32)
        couts.append(cox + coc)
        win = wo

    # Head: fold the NCHW flatten order of both paths, fc_c and fc into one
    # (fin*fin*Cfinal, 1) vector + scalar bias (fc_c's output is not a module output,
    # so the two linears compose exactly).  Kernel flat lane order is (h, w, channel).
    cfin = couts[-1]
    cx = tp["convs"][0][0].shape[0]           # x-path channels in the final map
    fc_w, fc_c_w = tp["fc_w"], tp["fc_c_w"]
    fc_c_b, fc_b = tp["fc_c_b"], tp["fc_b"]
    nflat = fin * fin
    wx_head = fc_w[0, :cx * nflat]                       # fc weights on x flatten
    wc_head = fc_w[0, cx * nflat:]                       # fc weights on fc_c output
    comp = wc_head @ fc_c_w                              # composed condi-path weights
    wh = np.zeros((fin, fin, cfin), np.float32)
    for c in range(cx):
        wh[:, :, c] = wx_head[c * nflat:(c + 1) * nflat].reshape(fin, fin)
    for c in range(cfin - cx):
        wh[:, :, cx + c] = comp[c * nflat:(c + 1) * nflat].reshape(fin, fin)
    arrs["wh"] = jnp.asarray(wh.reshape(fin * fin * cfin, 1), jnp.bfloat16)
    arrs["bh"] = jnp.asarray(
        np.array([[float(wc_head @ fc_c_b + fc_b[0])]], np.float32))
    return arrs


# --------------------------- pure-JAX torch reference --------------------------


def torch_reference(tp, x, condi_x):
    nl = tp["n_layer"]

    def conv2d(z, w, b):
        z = lax.conv_general_dilated(z, jnp.asarray(w), window_strides=(2, 2),
                                     padding=((2, 2), (2, 2)),
                                     dimension_numbers=("NCHW", "OIHW", "NCHW"))
        return z + jnp.asarray(b).reshape(1, -1, 1, 1)

    def path(z, convs, bns):
        for layer in range(nl):
            idx = nl - 1 - layer
            w, b = convs[idx]
            z = conv2d(z, w, b)
            if layer != 0:
                g, be = bns[idx]
                mean = jnp.mean(z, axis=(0, 2, 3), keepdims=True)
                var = jnp.mean((z - mean) ** 2, axis=(0, 2, 3), keepdims=True)
                z = ((z - mean) * lax.rsqrt(var + 1e-5)
                     * jnp.asarray(g).reshape(1, -1, 1, 1)
                     + jnp.asarray(be).reshape(1, -1, 1, 1))
            z = jnp.where(z >= 0.0, z, 0.2 * z)
        return z

    n = x.shape[0]
    xf = path(x, tp["convs"], tp["BNs"]).reshape(n, -1)
    cf = path(condi_x, tp["convs_condi"], tp["BNs_condi"]).reshape(n, -1)
    cvec = cf @ jnp.asarray(tp["fc_c_w"]).T + jnp.asarray(tp["fc_c_b"])
    hcat = jnp.concatenate([xf, cvec], axis=1)
    logit = hcat @ jnp.asarray(tp["fc_w"]).T + jnp.asarray(tp["fc_b"])
    return jax.nn.sigmoid(logit)


# ------------------------------------ main -------------------------------------


if __name__ == "__main__":
    key = jax.random.PRNGKey(0)
    kp, kx, kc = jax.random.split(key, 3)

    tp = init_torch_params(kp, featmap_dim=16, condi_featmap_dim=16,
                           n_channel=1, n_layer=3, n_condition=8)
    arrs = pack_params(tp, img_hw=32)

    # PyTorch-style NCHW inputs; spatial 32 so three stride-2 convs end at 4x4.
    x = jax.random.normal(kx, (2, 1, 32, 32), jnp.float32)
    condi_x = jax.random.normal(kc, (2, 1, 32, 32), jnp.float32)

    out = jax.block_until_ready(discriminator_forward(arrs, x, condi_x))

    assert out.shape == (2, 1), out.shape
    assert bool(jnp.all(jnp.isfinite(out)))
    assert bool(jnp.all((out >= 0.0) & (out <= 1.0)))

    # check against a pure-JAX NCHW reference (bf16 MXU operands -> loose atol)
    ref = jax.block_until_ready(torch_reference(tp, x, condi_x))
    np.testing.assert_allclose(np.asarray(out), np.asarray(ref), atol=0.05, rtol=0.0)

    print("KERNEL_OK")
</pallas_src>

<mosaic_0001>
module attributes {stable_mosaic.version = 11 : i64} {
  func.func @_disc_kernel(%arg0: i32, %arg1: memref<32x2x64xbf16, #tpu.memory_space<vmem>>, %arg2: memref<320x128xbf16, #tpu.memory_space<vmem>>, %arg3: memref<1x128xf32, #tpu.memory_space<vmem>>, %arg4: memref<640x128xbf16, #tpu.memory_space<vmem>>, %arg5: memref<1x128xf32, #tpu.memory_space<vmem>>, %arg6: memref<1x128xf32, #tpu.memory_space<vmem>>, %arg7: memref<1x128xf32, #tpu.memory_space<vmem>>, %arg8: memref<640x128xbf16, #tpu.memory_space<vmem>>, %arg9: memref<1x128xf32, #tpu.memory_space<vmem>>, %arg10: memref<1x128xf32, #tpu.memory_space<vmem>>, %arg11: memref<1x128xf32, #tpu.memory_space<vmem>>, %arg12: memref<512x1xbf16, #tpu.memory_space<vmem>>, %arg13: memref<1x1xf32, #tpu.memory_space<vmem>>, %arg14: memref<2x1xf32, #tpu.memory_space<vmem>>, %arg15: memref<36x2x64xbf16, #tpu.memory_space<vmem>>, %arg16: memref<20x2x128xbf16, #tpu.memory_space<vmem>>, %arg17: memref<12x2x128xbf16, #tpu.memory_space<vmem>>) attributes {dimension_semantics = [#tpu.dimension_semantics<parallel>], iteration_bounds = array<i64: 1>, scalar_prefetch = 0 : i64, scratch_operands = 3 : i64, tpu.core_type = #tpu.core_type<tc>, window_params = [{transform_indices = @transform_0, window_bounds = array<i64: 32, 2, 64>}, {pipeline_mode = #tpu.pipeline_mode<synchronous>, transform_indices = @transform_1, window_bounds = array<i64: 320, 128>}, {pipeline_mode = #tpu.pipeline_mode<synchronous>, transform_indices = @transform_2, window_bounds = array<i64: 1, 128>}, {pipeline_mode = #tpu.pipeline_mode<synchronous>, transform_indices = @transform_3, window_bounds = array<i64: 640, 128>}, {pipeline_mode = #tpu.pipeline_mode<synchronous>, transform_indices = @transform_4, window_bounds = array<i64: 1, 128>}, {pipeline_mode = #tpu.pipeline_mode<synchronous>, transform_indices = @transform_5, window_bounds = array<i64: 1, 128>}, {pipeline_mode = #tpu.pipeline_mode<synchronous>, transform_indices = @transform_6, window_bounds = array<i64: 1, 128>}, {pipeline_mode = #tpu.pipeline_mode<synchronous>, transform_indices = @transform_7, window_bounds = array<i64: 640, 128>}, {pipeline_mode = #tpu.pipeline_mode<synchronous>, transform_indices = @transform_8, window_bounds = array<i64: 1, 128>}, {pipeline_mode = #tpu.pipeline_mode<synchronous>, transform_indices = @transform_9, window_bounds = array<i64: 1, 128>}, {pipeline_mode = #tpu.pipeline_mode<synchronous>, transform_indices = @transform_10, window_bounds = array<i64: 1, 128>}, {pipeline_mode = #tpu.pipeline_mode<synchronous>, transform_indices = @transform_11, window_bounds = array<i64: 512, 1>}, {pipeline_mode = #tpu.pipeline_mode<synchronous>, transform_indices = @transform_12, window_bounds = array<i64: 1, 1>}, {transform_indices = @transform_13, window_bounds = array<i64: 2, 1>}]} {
    %c0 = arith.constant 0 : index
    %c0_0 = arith.constant 0 : index
    %c0_1 = arith.constant 0 : index
    %0 = vector.load %arg1[%c0, %c0_0, %c0_1] : memref<32x2x64xbf16, #tpu.memory_space<vmem>>, vector<32x2x64xbf16>
    %cst = arith.constant 0.000000e+00 : bf16
    %1 = vector.broadcast %cst : bf16 to vector<2x2x64xbf16>
    %c0_2 = arith.constant 0 : index
    %c0_3 = arith.constant 0 : index
    %c0_4 = arith.constant 0 : index
    %2 = vector.load %arg15[%c0_2, %c0_3, %c0_4] : memref<36x2x64xbf16, #tpu.memory_space<vmem>>, vector<2x2x64xbf16>
    tpu.vector_store %arg15[%c0_2, %c0_3, %c0_4], %1 {strides = array<i32>} : memref<36x2x64xbf16, #tpu.memory_space<vmem>>, vector<2x2x64xbf16>,
    %c2 = arith.constant 2 : index
    %c0_5 = arith.constant 0 : index
    %c0_6 = arith.constant 0 : index
    %3 = vector.load %arg15[%c2, %c0_5, %c0_6] : memref<36x2x64xbf16, #tpu.memory_space<vmem>>, vector<32x2x64xbf16>
    tpu.vector_store %arg15[%c2, %c0_5, %c0_6], %0 {strides = array<i32>} : memref<36x2x64xbf16, #tpu.memory_space<vmem>>, vector<32x2x64xbf16>,
    %c34 = arith.constant 34 : index
    %c0_7 = arith.constant 0 : index
    %c0_8 = arith.constant 0 : index
    %4 = vector.load %arg15[%c34, %c0_7, %c0_8] : memref<36x2x64xbf16, #tpu.memory_space<vmem>>, vector<2x2x64xbf16>
    tpu.vector_store %arg15[%c34, %c0_7, %c0_8], %1 {strides = array<i32>} : memref<36x2x64xbf16, #tpu.memory_space<vmem>>, vector<2x2x64xbf16>,
    %c0_9 = arith.constant 0 : index
    %c0_10 = arith.constant 0 : index
    %c0_11 = arith.constant 0 : index
    %5 = vector.load %arg15[%c0_9, %c0_10, %c0_11] : memref<36x2x64xbf16, #tpu.memory_space<vmem>>, vector<36x2x64xbf16>
    %6 = vector.shape_cast %5 : vector<36x2x64xbf16> to vector<18x2x2x64xbf16>
    %7 = vector.extract_strided_slice %6 {offsets = [0, 0, 0, 0], sizes = [16, 1, 2, 64], strides = [1, 1, 1, 1]} : vector<18x2x2x64xbf16> to vector<16x1x2x64xbf16>
    %8 = vector.shape_cast %7 : vector<16x1x2x64xbf16> to vector<16x2x64xbf16>
    %9 = vector.extract_strided_slice %6 {offsets = [0, 1, 0, 0], sizes = [16, 1, 2, 64], strides = [1, 1, 1, 1]} : vector<18x2x2x64xbf16> to vector<16x1x2x64xbf16>
    %10 = vector.shape_cast %9 : vector<16x1x2x64xbf16> to vector<16x2x64xbf16>
    %11 = vector.extract_strided_slice %6 {offsets = [1, 0, 0, 0], sizes = [16, 1, 2, 64], strides = [1, 1, 1, 1]} : vector<18x2x2x64xbf16> to vector<16x1x2x64xbf16>
    %12 = vector.shape_cast %11 : vector<16x1x2x64xbf16> to vector<16x2x64xbf16>
    %13 = vector.extract_strided_slice %6 {offsets = [1, 1, 0, 0], sizes = [16, 1, 2, 64], strides = [1, 1, 1, 1]} : vector<18x2x2x64xbf16> to vector<16x1x2x64xbf16>
    %14 = vector.shape_cast %13 : vector<16x1x2x64xbf16> to vector<16x2x64xbf16>
    %15 = vector.extract_strided_slice %6 {offsets = [2, 0, 0, 0], sizes = [16, 1, 2, 64], strides = [1, 1, 1, 1]} : vector<18x2x2x64xbf16> to vector<16x1x2x64xbf16>
    %16 = vector.shape_cast %15 : vector<16x1x2x64xbf16> to vector<16x2x64xbf16>
    %17 = tpu.concatenate %8, %10, %12, %14, %16 in 2 : vector<16x2x64xbf16>, vector<16x2x64xbf16>, vector<16x2x64xbf16>, vector<16x2x64xbf16>, vector<16x2x64xbf16> -> vector<16x2x320xbf16>
    %18 = vector.shape_cast %17 : vector<16x2x320xbf16> to vector<32x320xbf16>
    %c0_12 = arith.constant 0 : index
    %c0_13 = arith.constant 0 : index
    %19 = vector.load %arg2[%c0_12, %c0_13] : memref<320x128xbf16, #tpu.memory_space<vmem>>, vector<320x128xbf16>
    %cst_14 = arith.constant dense<0.000000e+00> : vector<32x128xf32>
    %20 = tpu.matmul %18, %19, %cst_14 {dimension_numbers = #tpu.dot_dimension_numbers<[1], [0], [0], [1], [0, 0, 1, 1], [], []>} : vector<32x320xbf16>, vector<320x128xbf16>, vector<32x128xf32> -> vector<32x128xf32>
    %c0_15 = arith.constant 0 : index
    %c0_16 = arith.constant 0 : index
    %21 = vector.load %arg3[%c0_15, %c0_16] : memref<1x128xf32, #tpu.memory_space<vmem>>, vector<1x128xf32>
    %22 = vector.broadcast %21 : vector<1x128xf32> to vector<32x128xf32>
    %23 = arith.addf %20, %22 : vector<32x128xf32>
    %cst_17 = arith.constant 0.000000e+00 : f32
    %24 = vector.broadcast %cst_17 : f32 to vector<32x128xf32>
    %25 = arith.cmpf oge, %23, %24 : vector<32x128xf32>
    %cst_18 = arith.constant 2.000000e-01 : f32
    %26 = vector.broadcast %cst_18 : f32 to vector<32x128xf32>
    %27 = arith.mulf %26, %23 : vector<32x128xf32>
    %28 = arith.select %25, %23, %27 : vector<32x128xi1>, vector<32x128xf32>
    %29 = arith.truncf %28 : vector<32x128xf32> to vector<32x128xbf16>
    %30 = vector.shape_cast %29 : vector<32x128xbf16> to vector<16x2x128xbf16>
    %cst_19 = arith.constant 0.000000e+00 : bf16
    %31 = vector.broadcast %cst_19 : bf16 to vector<2x2x128xbf16>
    %c0_20 = arith.constant 0 : index
    %c0_21 = arith.constant 0 : index
    %c0_22 = arith.constant 0 : index
    %32 = vector.load %arg16[%c0_20, %c0_21, %c0_22] : memref<20x2x128xbf16, #tpu.memory_space<vmem>>, vector<2x2x128xbf16>
    tpu.vector_store %arg16[%c0_20, %c0_21, %c0_22], %31 {strides = array<i32>} : memref<20x2x128xbf16, #tpu.memory_space<vmem>>, vector<2x2x128xbf16>,
    %c2_23 = arith.constant 2 : index
    %c0_24 = arith.constant 0 : index
    %c0_25 = arith.constant 0 : index
    %33 = vector.load %arg16[%c2_23, %c0_24, %c0_25] : memref<20x2x128xbf16, #tpu.memory_space<vmem>>, vector<16x2x128xbf16>
    tpu.vector_store %arg16[%c2_23, %c0_24, %c0_25], %30 {strides = array<i32>} : memref<20x2x128xbf16, #tpu.memory_space<vmem>>, vector<16x2x128xbf16>,
    %c18 = arith.constant 18 : index
    %c0_26 = arith.constant 0 : index
    %c0_27 = arith.constant 0 : index
    %34 = vector.load %arg16[%c18, %c0_26, %c0_27] : memref<20x2x128xbf16, #tpu.memory_space<vmem>>, vector<2x2x128xbf16>
    tpu.vector_store %arg16[%c18, %c0_26, %c0_27], %31 {strides = array<i32>} : memref<20x2x128xbf16, #tpu.memory_space<vmem>>, vector<2x2x128xbf16>,
    %c0_28 = arith.constant 0 : index
    %c0_29 = arith.constant 0 : index
    %c0_30 = arith.constant 0 : index
    %35 = vector.load %arg16[%c0_28, %c0_29, %c0_30] : memref<20x2x128xbf16, #tpu.memory_space<vmem>>, vector<20x2x128xbf16>
    %36 = vector.shape_cast %35 : vector<20x2x128xbf16> to vector<10x2x2x128xbf16>
    %37 = vector.extract_strided_slice %36 {offsets = [0, 0, 0, 0], sizes = [8, 1, 2, 128], strides = [1, 1, 1, 1]} : vector<10x2x2x128xbf16> to vector<8x1x2x128xbf16>
    %38 = vector.shape_cast %37 : vector<8x1x2x128xbf16> to vector<8x2x128xbf16>
    %39 = vector.extract_strided_slice %36 {offsets = [0, 1, 0, 0], sizes = [8, 1, 2, 128], strides = [1, 1, 1, 1]} : vector<10x2x2x128xbf16> to vector<8x1x2x128xbf16>
    %40 = vector.shape_cast %39 : vector<8x1x2x128xbf16> to vector<8x2x128xbf16>
    %41 = vector.extract_strided_slice %36 {offsets = [1, 0, 0, 0], sizes = [8, 1, 2, 128], strides = [1, 1, 1, 1]} : vector<10x2x2x128xbf16> to vector<8x1x2x128xbf16>
    %42 = vector.shape_cast %41 : vector<8x1x2x128xbf16> to vector<8x2x128xbf16>
    %43 = vector.extract_strided_slice %36 {offsets = [1, 1, 0, 0], sizes = [8, 1, 2, 128], strides = [1, 1, 1, 1]} : vector<10x2x2x128xbf16> to vector<8x1x2x128xbf16>
    %44 = vector.shape_cast %43 : vector<8x1x2x128xbf16> to vector<8x2x128xbf16>
    %45 = vector.extract_strided_slice %36 {offsets = [2, 0, 0, 0], sizes = [8, 1, 2, 128], strides = [1, 1, 1, 1]} : vector<10x2x2x128xbf16> to vector<8x1x2x128xbf16>
    %46 = vector.shape_cast %45 : vector<8x1x2x128xbf16> to vector<8x2x128xbf16>
    %47 = tpu.concatenate %38, %40, %42, %44, %46 in 2 : vector<8x2x128xbf16>, vector<8x2x128xbf16>, vector<8x2x128xbf16>, vector<8x2x128xbf16>, vector<8x2x128xbf16> -> vector<8x2x640xbf16>
    %48 = vector.shape_cast %47 : vector<8x2x640xbf16> to vector<16x640xbf16>
    %c0_31 = arith.constant 0 : index
    %c0_32 = arith.constant 0 : index
    %49 = vector.load %arg4[%c0_31, %c0_32] : memref<640x128xbf16, #tpu.memory_space<vmem>>, vector<640x128xbf16>
    %cst_33 = arith.constant dense<0.000000e+00> : vector<16x128xf32>
    %50 = tpu.matmul %48, %49, %cst_33 {dimension_numbers = #tpu.dot_dimension_numbers<[1], [0], [0], [1], [0, 0, 1, 1], [], []>} : vector<16x640xbf16>, vector<640x128xbf16>, vector<16x128xf32> -> vector<16x128xf32>
    %c0_34 = arith.constant 0 : index
    %c0_35 = arith.constant 0 : index
    %51 = vector.load %arg5[%c0_34, %c0_35] : memref<1x128xf32, #tpu.memory_space<vmem>>, vector<1x128xf32>
    %52 = vector.broadcast %51 : vector<1x128xf32> to vector<16x128xf32>
    %53 = arith.addf %50, %52 : vector<16x128xf32>
    %c0_36 = arith.constant 0 : index
    %c0_37 = arith.constant 0 : index
    %54 = vector.load %arg6[%c0_36, %c0_37] : memref<1x128xf32, #tpu.memory_space<vmem>>, vector<1x128xf32>
    %c0_38 = arith.constant 0 : index
    %c0_39 = arith.constant 0 : index
    %55 = vector.load %arg7[%c0_38, %c0_39] : memref<1x128xf32, #tpu.memory_space<vmem>>, vector<1x128xf32>
    %cst_40 = arith.constant dense<0.000000e+00> : vector<128xf32>
    %56 = vector.multi_reduction <add>, %53, %cst_40 [0] : vector<16x128xf32> to vector<128xf32>
    %57 = vector.shape_cast %56 : vector<128xf32> to vector<1x128xf32>
    %cst_41 = arith.constant 1.600000e+01 : f32
    %58 = vector.broadcast %cst_41 : f32 to vector<1x128xf32>
    %59 = arith.divf %57, %58 : vector<1x128xf32>
    %c16_i32 = arith.constant 16 : i32
    %60 = tpu.dynamic_rotate %59 by %c16_i32 dim 1 : vector<1x128xf32>, i32 -> vector<1x128xf32>
    %61 = arith.addf %59, %60 : vector<1x128xf32>
    %c32_i32 = arith.constant 32 : i32
    %62 = tpu.dynamic_rotate %61 by %c32_i32 dim 1 : vector<1x128xf32>, i32 -> vector<1x128xf32>
    %63 = arith.addf %61, %62 : vector<1x128xf32>
    %c64_i32 = arith.constant 64 : i32
    %64 = tpu.dynamic_rotate %63 by %c64_i32 dim 1 : vector<1x128xf32>, i32 -> vector<1x128xf32>
    %65 = arith.addf %63, %64 : vector<1x128xf32>
    %cst_42 = arith.constant 1.250000e-01 : f32
    %66 = vector.broadcast %cst_42 : f32 to vector<1x128xf32>
    %67 = arith.mulf %65, %66 : vector<1x128xf32>
    %68 = vector.broadcast %67 : vector<1x128xf32> to vector<16x128xf32>
    %69 = arith.subf %53, %68 : vector<16x128xf32>
    %70 = arith.mulf %69, %69 : vector<16x128xf32>
    %cst_43 = arith.constant dense<0.000000e+00> : vector<128xf32>
    %71 = vector.multi_reduction <add>, %70, %cst_43 [0] : vector<16x128xf32> to vector<128xf32>
    %72 = vector.shape_cast %71 : vector<128xf32> to vector<1x128xf32>
    %cst_44 = arith.constant 1.600000e+01 : f32
    %73 = vector.broadcast %cst_44 : f32 to vector<1x128xf32>
    %74 = arith.divf %72, %73 : vector<1x128xf32>
    %c16_i32_45 = arith.constant 16 : i32
    %75 = tpu.dynamic_rotate %74 by %c16_i32_45 dim 1 : vector<1x128xf32>, i32 -> vector<1x128xf32>
    %76 = arith.addf %74, %75 : vector<1x128xf32>
    %c32_i32_46 = arith.constant 32 : i32
    %77 = tpu.dynamic_rotate %76 by %c32_i32_46 dim 1 : vector<1x128xf32>, i32 -> vector<1x128xf32>
    %78 = arith.addf %76, %77 : vector<1x128xf32>
    %c64_i32_47 = arith.constant 64 : i32
    %79 = tpu.dynamic_rotate %78 by %c64_i32_47 dim 1 : vector<1x128xf32>, i32 -> vector<1x128xf32>
    %80 = arith.addf %78, %79 : vector<1x128xf32>
    %cst_48 = arith.constant 1.250000e-01 : f32
    %81 = vector.broadcast %cst_48 : f32 to vector<1x128xf32>
    %82 = arith.mulf %80, %81 : vector<1x128xf32>
    %cst_49 = arith.constant 9.99999974E-6 : f32
    %83 = vector.broadcast %cst_49 : f32 to vector<1x128xf32>
    %84 = arith.addf %82, %83 : vector<1x128xf32>
    %85 = math.rsqrt %84 : vector<1x128xf32>
    %86 = vector.broadcast %85 : vector<1x128xf32> to vector<16x128xf32>
    %87 = arith.mulf %69, %86 : vector<16x128xf32>
    %88 = vector.broadcast %54 : vector<1x128xf32> to vector<16x128xf32>
    %89 = arith.mulf %87, %88 : vector<16x128xf32>
    %90 = vector.broadcast %55 : vector<1x128xf32> to vector<16x128xf32>
    %91 = arith.addf %89, %90 : vector<16x128xf32>
    %cst_50 = arith.constant 0.000000e+00 : f32
    %92 = vector.broadcast %cst_50 : f32 to vector<16x128xf32>
    %93 = arith.cmpf oge, %91, %92 : vector<16x128xf32>
    %cst_51 = arith.constant 2.000000e-01 : f32
    %94 = vector.broadcast %cst_51 : f32 to vector<16x128xf32>
    %95 = arith.mulf %94, %91 : vector<16x128xf32>
    %96 = arith.select %93, %91, %95 : vector<16x128xi1>, vector<16x128xf32>
    %97 = arith.truncf %96 : vector<16x128xf32> to vector<16x128xbf16>
    %98 = vector.shape_cast %97 : vector<16x128xbf16> to vector<8x2x128xbf16>
    %cst_52 = arith.constant 0.000000e+00 : bf16
    %99 = vector.broadcast %cst_52 : bf16 to vector<2x2x128xbf16>
    %c0_53 = arith.constant 0 : index
    %c0_54 = arith.constant 0 : index
    %c0_55 = arith.constant 0 : index
    %100 = vector.load %arg17[%c0_53, %c0_54, %c0_55] : memref<12x2x128xbf16, #tpu.memory_space<vmem>>, vector<2x2x128xbf16>
    tpu.vector_store %arg17[%c0_53, %c0_54, %c0_55], %99 {strides = array<i32>} : memref<12x2x128xbf16, #tpu.memory_space<vmem>>, vector<2x2x128xbf16>,
    %c2_56 = arith.constant 2 : index
    %c0_57 = arith.constant 0 : index
    %c0_58 = arith.constant 0 : index
    %101 = vector.load %arg17[%c2_56, %c0_57, %c0_58] : memref<12x2x128xbf16, #tpu.memory_space<vmem>>, vector<8x2x128xbf16>
    tpu.vector_store %arg17[%c2_56, %c0_57, %c0_58], %98 {strides = array<i32>} : memref<12x2x128xbf16, #tpu.memory_space<vmem>>, vector<8x2x128xbf16>,
    %c10 = arith.constant 10 : index
    %c0_59 = arith.constant 0 : index
    %c0_60 = arith.constant 0 : index
    %102 = vector.load %arg17[%c10, %c0_59, %c0_60] : memref<12x2x128xbf16, #tpu.memory_space<vmem>>, vector<2x2x128xbf16>
    tpu.vector_store %arg17[%c10, %c0_59, %c0_60], %99 {strides = array<i32>} : memref<12x2x128xbf16, #tpu.memory_space<vmem>>, vector<2x2x128xbf16>,
    %c0_61 = arith.constant 0 : index
    %c0_62 = arith.constant 0 : index
    %c0_63 = arith.constant 0 : index
    %103 = vector.load %arg17[%c0_61, %c0_62, %c0_63] : memref<12x2x128xbf16, #tpu.memory_space<vmem>>, vector<12x2x128xbf16>
    %104 = vector.shape_cast %103 : vector<12x2x128xbf16> to vector<6x2x2x128xbf16>
    %105 = vector.extract_strided_slice %104 {offsets = [0, 0, 0, 0], sizes = [4, 1, 2, 128], strides = [1, 1, 1, 1]} : vector<6x2x2x128xbf16> to vector<4x1x2x128xbf16>
    %106 = vector.shape_cast %105 : vector<4x1x2x128xbf16> to vector<4x2x128xbf16>
    %107 = vector.extract_strided_slice %104 {offsets = [0, 1, 0, 0], sizes = [4, 1, 2, 128], strides = [1, 1, 1, 1]} : vector<6x2x2x128xbf16> to vector<4x1x2x128xbf16>
    %108 = vector.shape_cast %107 : vector<4x1x2x128xbf16> to vector<4x2x128xbf16>
    %109 = vector.extract_strided_slice %104 {offsets = [1, 0, 0, 0], sizes = [4, 1, 2, 128], strides = [1, 1, 1, 1]} : vector<6x2x2x128xbf16> to vector<4x1x2x128xbf16>
    %110 = vector.shape_cast %109 : vector<4x1x2x128xbf16> to vector<4x2x128xbf16>
    %111 = vector.extract_strided_slice %104 {offsets = [1, 1, 0, 0], sizes = [4, 1, 2, 128], strides = [1, 1, 1, 1]} : vector<6x2x2x128xbf16> to vector<4x1x2x128xbf16>
    %112 = vector.shape_cast %111 : vector<4x1x2x128xbf16> to vector<4x2x128xbf16>
    %113 = vector.extract_strided_slice %104 {offsets = [2, 0, 0, 0], sizes = [4, 1, 2, 128], strides = [1, 1, 1, 1]} : vector<6x2x2x128xbf16> to vector<4x1x2x128xbf16>
    %114 = vector.shape_cast %113 : vector<4x1x2x128xbf16> to vector<4x2x128xbf16>
    %115 = tpu.concatenate %106, %108, %110, %112, %114 in 2 : vector<4x2x128xbf16>, vector<4x2x128xbf16>, vector<4x2x128xbf16>, vector<4x2x128xbf16>, vector<4x2x128xbf16> -> vector<4x2x640xbf16>
    %116 = vector.shape_cast %115 : vector<4x2x640xbf16> to vector<8x640xbf16>
    %c0_64 = arith.constant 0 : index
    %c0_65 = arith.constant 0 : index
    %117 = vector.load %arg8[%c0_64, %c0_65] : memref<640x128xbf16, #tpu.memory_space<vmem>>, vector<640x128xbf16>
    %cst_66 = arith.constant dense<0.000000e+00> : vector<8x128xf32>
    %118 = tpu.matmul %116, %117, %cst_66 {dimension_numbers = #tpu.dot_dimension_numbers<[1], [0], [0], [1], [0, 0, 1, 1], [], []>} : vector<8x640xbf16>, vector<640x128xbf16>, vector<8x128xf32> -> vector<8x128xf32>
    %c0_67 = arith.constant 0 : index
    %c0_68 = arith.constant 0 : index
    %119 = vector.load %arg9[%c0_67, %c0_68] : memref<1x128xf32, #tpu.memory_space<vmem>>, vector<1x128xf32>
    %120 = vector.broadcast %119 : vector<1x128xf32> to vector<8x128xf32>
    %121 = arith.addf %118, %120 : vector<8x128xf32>
    %c0_69 = arith.constant 0 : index
    %c0_70 = arith.constant 0 : index
    %122 = vector.load %arg10[%c0_69, %c0_70] : memref<1x128xf32, #tpu.memory_space<vmem>>, vector<1x128xf32>
    %c0_71 = arith.constant 0 : index
    %c0_72 = arith.constant 0 : index
    %123 = vector.load %arg11[%c0_71, %c0_72] : memref<1x128xf32, #tpu.memory_space<vmem>>, vector<1x128xf32>
    %cst_73 = arith.constant dense<0.000000e+00> : vector<128xf32>
    %124 = vector.multi_reduction <add>, %121, %cst_73 [0] : vector<8x128xf32> to vector<128xf32>
    %125 = vector.shape_cast %124 : vector<128xf32> to vector<1x128xf32>
    %cst_74 = arith.constant 8.000000e+00 : f32
    %126 = vector.broadcast %cst_74 : f32 to vector<1x128xf32>
    %127 = arith.divf %125, %126 : vector<1x128xf32>
    %c32_i32_75 = arith.constant 32 : i32
    %128 = tpu.dynamic_rotate %127 by %c32_i32_75 dim 1 : vector<1x128xf32>, i32 -> vector<1x128xf32>
    %129 = arith.addf %127, %128 : vector<1x128xf32>
    %c64_i32_76 = arith.constant 64 : i32
    %130 = tpu.dynamic_rotate %129 by %c64_i32_76 dim 1 : vector<1x128xf32>, i32 -> vector<1x128xf32>
    %131 = arith.addf %129, %130 : vector<1x128xf32>
    %cst_77 = arith.constant 2.500000e-01 : f32
    %132 = vector.broadcast %cst_77 : f32 to vector<1x128xf32>
    %133 = arith.mulf %131, %132 : vector<1x128xf32>
    %134 = vector.broadcast %133 : vector<1x128xf32> to vector<8x128xf32>
    %135 = arith.subf %121, %134 : vector<8x128xf32>
    %136 = arith.mulf %135, %135 : vector<8x128xf32>
    %cst_78 = arith.constant dense<0.000000e+00> : vector<128xf32>
    %137 = vector.multi_reduction <add>, %136, %cst_78 [0] : vector<8x128xf32> to vector<128xf32>
    %138 = vector.shape_cast %137 : vector<128xf32> to vector<1x128xf32>
    %cst_79 = arith.constant 8.000000e+00 : f32
    %139 = vector.broadcast %cst_79 : f32 to vector<1x128xf32>
    %140 = arith.divf %138, %139 : vector<1x128xf32>
    %c32_i32_80 = arith.constant 32 : i32
    %141 = tpu.dynamic_rotate %140 by %c32_i32_80 dim 1 : vector<1x128xf32>, i32 -> vector<1x128xf32>
    %142 = arith.addf %140, %141 : vector<1x128xf32>
    %c64_i32_81 = arith.constant 64 : i32
    %143 = tpu.dynamic_rotate %142 by %c64_i32_81 dim 1 : vector<1x128xf32>, i32 -> vector<1x128xf32>
    %144 = arith.addf %142, %143 : vector<1x128xf32>
    %cst_82 = arith.constant 2.500000e-01 : f32
    %145 = vector.broadcast %cst_82 : f32 to vector<1x128xf32>
    %146 = arith.mulf %144, %145 : vector<1x128xf32>
    %cst_83 = arith.constant 9.99999974E-6 : f32
    %147 = vector.broadcast %cst_83 : f32 to vector<1x128xf32>
    %148 = arith.addf %146, %147 : vector<1x128xf32>
    %149 = math.rsqrt %148 : vector<1x128xf32>
    %150 = vector.broadcast %149 : vector<1x128xf32> to vector<8x128xf32>
    %151 = arith.mulf %135, %150 : vector<8x128xf32>
    %152 = vector.broadcast %122 : vector<1x128xf32> to vector<8x128xf32>
    %153 = arith.mulf %151, %152 : vector<8x128xf32>
    %154 = vector.broadcast %123 : vector<1x128xf32> to vector<8x128xf32>
    %155 = arith.addf %153, %154 : vector<8x128xf32>
    %cst_84 = arith.constant 0.000000e+00 : f32
    %156 = vector.broadcast %cst_84 : f32 to vector<8x128xf32>
    %157 = arith.cmpf oge, %155, %156 : vector<8x128xf32>
    %cst_85 = arith.constant 2.000000e-01 : f32
    %158 = vector.broadcast %cst_85 : f32 to vector<8x128xf32>
    %159 = arith.mulf %158, %155 : vector<8x128xf32>
    %160 = arith.select %157, %155, %159 : vector<8x128xi1>, vector<8x128xf32>
    %161 = arith.truncf %160 : vector<8x128xf32> to vector<8x128xbf16>
    %162 = vector.extract_strided_slice %161 {offsets = [0, 0], sizes = [2, 128], strides = [1, 1]} : vector<8x128xbf16> to vector<2x128xbf16>
    %163 = vector.extract_strided_slice %161 {offsets = [2, 0], sizes = [2, 128], strides = [1, 1]} : vector<8x128xbf16> to vector<2x128xbf16>
    %164 = vector.extract_strided_slice %161 {offsets = [4, 0], sizes = [2, 128], strides = [1, 1]} : vector<8x128xbf16> to vector<2x128xbf16>
    %165 = vector.extract_strided_slice %161 {offsets = [6, 0], sizes = [2, 128], strides = [1, 1]} : vector<8x128xbf16> to vector<2x128xbf16>
    %166 = tpu.concatenate %162, %163, %164, %165 in 1 : vector<2x128xbf16>, vector<2x128xbf16>, vector<2x128xbf16>, vector<2x128xbf16> -> vector<2x512xbf16>
    %c0_86 = arith.constant 0 : index
    %c0_87 = arith.constant 0 : index
    %167 = vector.load %arg12[%c0_86, %c0_87] : memref<512x1xbf16, #tpu.memory_space<vmem>>, vector<512x1xbf16>
    %cst_88 = arith.constant dense<0.000000e+00> : vector<2x1xf32>
    %168 = tpu.matmul %166, %167, %cst_88 {dimension_numbers = #tpu.dot_dimension_numbers<[1], [0], [0], [1], [0, 0, 1, 1], [], []>} : vector<2x512xbf16>, vector<512x1xbf16>, vector<2x1xf32> -> vector<2x1xf32>
    %c0_89 = arith.constant 0 : index
    %c0_90 = arith.constant 0 : index
    %169 = vector.load %arg13[%c0_89, %c0_90] : memref<1x1xf32, #tpu.memory_space<vmem>>, vector<1x1xf32>
    %170 = vector.broadcast %169 : vector<1x1xf32> to vector<2x1xf32>
    %171 = arith.addf %168, %170 : vector<2x1xf32>
    %172 = arith.negf %171 : vector<2x1xf32>
    %173 = math.exp %172 : vector<2x1xf32>
    %cst_91 = arith.constant 1.000000e+00 : f32
    %174 = vector.broadcast %cst_91 : f32 to vector<2x1xf32>
    %175 = arith.addf %174, %173 : vector<2x1xf32>
    %176 = arith.divf %174, %175 : vector<2x1xf32>
    %c0_92 = arith.constant 0 : index
    %c0_93 = arith.constant 0 : index
    %177 = vector.load %arg14[%c0_92, %c0_93] : memref<2x1xf32, #tpu.memory_space<vmem>>, vector<2x1xf32>
    tpu.vector_store %arg14[%c0_92, %c0_93], %176 {strides = array<i32>} : memref<2x1xf32, #tpu.memory_space<vmem>>, vector<2x1xf32>,
    return
  }
  func.func @transform_0(%arg0: i32) -> (i32, i32, i32) {
    %c0_i32 = arith.constant 0 : i32
    %c0_i32_0 = arith.constant 0 : i32
    %c0_i32_1 = arith.constant 0 : i32
    return %c0_i32, %arg0, %c0_i32_0 : i32, i32, i32
  }
  func.func @transform_1(%arg0: i32) -> (i32, i32) {
    %c0_i32 = arith.constant 0 : i32
    %c0_i32_0 = arith.constant 0 : i32
    %c0_i32_1 = arith.constant 0 : i32
    return %c0_i32, %c0_i32_0 : i32, i32
  }
  func.func @transform_2(%arg0: i32) -> (i32, i32) {
    %c0_i32 = arith.constant 0 : i32
    %c0_i32_0 = arith.constant 0 : i32
    %c0_i32_1 = arith.constant 0 : i32
    return %c0_i32, %c0_i32_0 : i32, i32
  }
  func.func @transform_3(%arg0: i32) -> (i32, i32) {
    %c0_i32 = arith.constant 0 : i32
    %c0_i32_0 = arith.constant 0 : i32
    %c0_i32_1 = arith.constant 0 : i32
    return %c0_i32, %c0_i32_0 : i32, i32
  }
  func.func @transform_4(%arg0: i32) -> (i32, i32) {
    %c0_i32 = arith.constant 0 : i32
    %c0_i32_0 = arith.constant 0 : i32
    %c0_i32_1 = arith.constant 0 : i32
    return %c0_i32, %c0_i32_0 : i32, i32
  }
  func.func @transform_5(%arg0: i32) -> (i32, i32) {
    %c0_i32 = arith.constant 0 : i32
    %c0_i32_0 = arith.constant 0 : i32
    %c0_i32_1 = arith.constant 0 : i32
    return %c0_i32, %c0_i32_0 : i32, i32
  }
  func.func @transform_6(%arg0: i32) -> (i32, i32) {
    %c0_i32 = arith.constant 0 : i32
    %c0_i32_0 = arith.constant 0 : i32
    %c0_i32_1 = arith.constant 0 : i32
    return %c0_i32, %c0_i32_0 : i32, i32
  }
  func.func @transform_7(%arg0: i32) -> (i32, i32) {
    %c0_i32 = arith.constant 0 : i32
    %c0_i32_0 = arith.constant 0 : i32
    %c0_i32_1 = arith.constant 0 : i32
    return %c0_i32, %c0_i32_0 : i32, i32
  }
  func.func @transform_8(%arg0: i32) -> (i32, i32) {
    %c0_i32 = arith.constant 0 : i32
    %c0_i32_0 = arith.constant 0 : i32
    %c0_i32_1 = arith.constant 0 : i32
    return %c0_i32, %c0_i32_0 : i32, i32
  }
  func.func @transform_9(%arg0: i32) -> (i32, i32) {
    %c0_i32 = arith.constant 0 : i32
    %c0_i32_0 = arith.constant 0 : i32
    %c0_i32_1 = arith.constant 0 : i32
    return %c0_i32, %c0_i32_0 : i32, i32
  }
  func.func @transform_10(%arg0: i32) -> (i32, i32) {
    %c0_i32 = arith.constant 0 : i32
    %c0_i32_0 = arith.constant 0 : i32
    %c0_i32_1 = arith.constant 0 : i32
    return %c0_i32, %c0_i32_0 : i32, i32
  }
  func.func @transform_11(%arg0: i32) -> (i32, i32) {
    %c0_i32 = arith.constant 0 : i32
    %c0_i32_0 = arith.constant 0 : i32
    %c0_i32_1 = arith.constant 0 : i32
    return %c0_i32, %c0_i32_0 : i32, i32
  }
  func.func @transform_12(%arg0: i32) -> (i32, i32) {
    %c0_i32 = arith.constant 0 : i32
    %c0_i32_0 = arith.constant 0 : i32
    %c0_i32_1 = arith.constant 0 : i32
    return %c0_i32, %c0_i32_0 : i32, i32
  }
  func.func @transform_13(%arg0: i32) -> (i32, i32) {
    %c0_i32 = arith.constant 0 : i32
    %c0_i32_0 = arith.constant 0 : i32
    return %arg0, %c0_i32 : i32, i32
  }
}

</mosaic_0001>

<llo_original>
// kernel: discriminator_forward.1
$region0: #{discriminator_forward.1}
  #allocation0 [shape = 'u32[]', space=smem, size = 0x4, offset = 0x4, fixed_abs, tag = 'smem constant byte address 0x4 - core index']
  #allocation1 [shape = 'u32[72,128]{1,0:T(1,128)}', space=vmem, size = 0x9000, scoped, tag = 'internal scratch']
  #allocation2 [shape = 'bf16[36,2,64]{2,1,0:T(2,128)(2,1)}', space=vmem, size = 0x4800, scoped, tag = 'scratch operand']
  #allocation3 [shape = 'bf16[20,2,128]{2,1,0:T(2,128)(2,1)}', space=vmem, size = 0x2800, scoped, tag = 'scratch operand']
  #allocation4 [shape = 'bf16[12,2,128]{2,1,0:T(2,128)(2,1)}', space=vmem, size = 0x1800, scoped, tag = 'scratch operand']
  #allocation5 [shape = 'f32[1,1]{1,0:T(1,128)S(1)}', space=vmem, size = 0x200, scoped, tag = 'scoped memory for discriminator_forward.1']
  %s0 = inlined_call_operand.vmem [shape: bf16[32,2,64], index: 0, kind: input, shape index: {}]
  %s1 = inlined_call_operand.vmem [shape: bf16[320,128], index: 1, kind: input, shape index: {}]
  %s2 = inlined_call_operand.hbm [shape: f32[1,128], index: 2, kind: input, shape index: {}]
  %s3 = inlined_call_operand.vmem [shape: bf16[640,128], index: 3, kind: input, shape index: {}]
  %s4 = inlined_call_operand.hbm [shape: f32[1,128], index: 4, kind: input, shape index: {}]
  %s5 = inlined_call_operand.hbm [shape: f32[1,128], index: 5, kind: input, shape index: {}]
  %s6 = inlined_call_operand.hbm [shape: f32[1,128], index: 6, kind: input, shape index: {}]
  %s7 = inlined_call_operand.vmem [shape: bf16[640,128], index: 7, kind: input, shape index: {}]
  %s8 = inlined_call_operand.hbm [shape: f32[1,128], index: 8, kind: input, shape index: {}]
  %s9 = inlined_call_operand.hbm [shape: f32[1,128], index: 9, kind: input, shape index: {}]
  %s10 = inlined_call_operand.hbm [shape: f32[1,128], index: 10, kind: input, shape index: {}]
  %s11 = inlined_call_operand.vmem [shape: bf16[512,1], index: 11, kind: input, shape index: {}]
  %s12 = inlined_call_operand.<no memory space> [shape: f32[1,1], index: 12, kind: input, shape index: {}]
  %s13 = inlined_call_operand.vmem [shape: f32[2,1], index: 13, kind: output, shape index: {}]
  %s14 = sld [smem:[#allocation0]]
  $region90: #{discriminator_forward.1} parent=0
    _
  %s16 = ssub.s32 1, %s14
  %s17 = scalar_select 0, %s16, %s14
  %v18 = vstv %s12
  %19 = vst [vmem:[#allocation5] sm:$0x1] %v18
  $region1: #{discriminator_forward.1} parent=0
    #allocation6 [shape = 'u8[512]{0}', space=vmem, size = 0x400, scoped, tag = 'input window, operand 2, single buffered']
    #allocation7 [shape = 's32[1]{0}', space=sflag, size = 0x4, scoped, tag = 'scoped memory for discriminator_forward.1']
    #allocation8 [shape = 'u8[512]{0}', space=vmem, size = 0x400, scoped, tag = 'input window, operand 4, single buffered']
    #allocation9 [shape = 's32[1]{0}', space=sflag, size = 0x4, scoped, tag = 'scoped memory for discriminator_forward.1']
    #allocation10 [shape = 'u8[512]{0}', space=vmem, size = 0x400, scoped, tag = 'input window, operand 5, single buffered']
    #allocation11 [shape = 'u8[512]{0}', space=vmem, size = 0x400, scoped, tag = 'input window, operand 6, single buffered']
    #allocation12 [shape = 's32[1]{0}', space=sflag, size = 0x4, scoped, tag = 'scoped memory for discriminator_forward.1']
    #allocation13 [shape = 'u8[512]{0}', space=vmem, size = 0x400, scoped, tag = 'input window, operand 8, single buffered']
    #allocation14 [shape = 'u8[512]{0}', space=vmem, size = 0x400, scoped, tag = 'input window, operand 9, single buffered']
    #allocation15 [shape = 's32[1]{0}', space=sflag, size = 0x4, scoped, tag = 'scoped memory for discriminator_forward.1']
    #allocation16 [shape = 'u8[512]{0}', space=vmem, size = 0x400, scoped, tag = 'input window, operand 10, single buffered']
    %20 = vsyncpa [#allocation7], 0
    %21 = vsyncpa [#allocation9], 0
    %22 = vsyncpa [#allocation12], 0
    %23 = vsyncpa [#allocation15], 0
    // Predicated region
    $region2: #{discriminator_forward.1} parent=1 // pred_check
      _
    $region3: #{discriminator_forward.1} parent=1 // pred_check_branch
      %25 = sbr.rel (0) target = $region5
    $region4: #{discriminator_forward.1} parent=1 // pred_region
      _
    $region5: #{discriminator_forward.1} parent=1 // pred_fallthru
      _
    // Predicated region
    $region6: #{discriminator_forward.1} parent=1 // pred_check
      _
    $region7: #{discriminator_forward.1} parent=1 // pred_check_branch
      %27 = sbr.rel (0) target = $region9
    $region8: #{discriminator_forward.1} parent=1 // pred_region
      _
    $region9: #{discriminator_forward.1} parent=1 // pred_fallthru
      _
    // Predicated region
    $region10: #{discriminator_forward.1} parent=1 // pred_check
      _
    $region11: #{discriminator_forward.1} parent=1 // pred_check_branch
      %29 = sbr.rel (0) target = $region13
    $region12: #{discriminator_forward.1} parent=1 // pred_region
      %31 = vsyncadd [#allocation7], 0
      %s33 = sshll.u32 %s2, 4
      %s34 = int_to_ptr.hbm [resolvable:$true] %s33
      %s35 = sshll.u32 [#allocation6], 4
      %s36 = int_to_ptr.vmem [resolvable:$true] %s35
      %38 = dma.hbm_to_vmem [thread:$0]  %s34, 16, %s36, [#allocation7]
    $region13: #{discriminator_forward.1} parent=1 // pred_fallthru
      _
    // Predicated region
    $region14: #{discriminator_forward.1} parent=1 // pred_check
      _
    $region15: #{discriminator_forward.1} parent=1 // pred_check_branch
      %40 = sbr.rel (0) target = $region17
    $region16: #{discriminator_forward.1} parent=1 // pred_region
      _
    $region17: #{discriminator_forward.1} parent=1 // pred_fallthru
      _
    // Predicated region
    $region18: #{discriminator_forward.1} parent=1 // pred_check
      _
    $region19: #{discriminator_forward.1} parent=1 // pred_check_branch
      %42 = sbr.rel (0) target = $region21
    $region20: #{discriminator_forward.1} parent=1 // pred_region
      %44 = vsyncadd [#allocation9], 0
      %s46 = sshll.u32 %s4, 4
      %s47 = int_to_ptr.hbm [resolvable:$true] %s46
      %s48 = sshll.u32 [#allocation8], 4
      %s49 = int_to_ptr.vmem [resolvable:$true] %s48
      %51 = dma.hbm_to_vmem [thread:$0]  %s47, 16, %s49, [#allocation9]
    $region21: #{discriminator_forward.1} parent=1 // pred_fallthru
      _
    // Predicated region
    $region22: #{discriminator_forward.1} parent=1 // pred_check
      _
    $region23: #{discriminator_forward.1} parent=1 // pred_check_branch
      %53 = sbr.rel (0) target = $region25
    $region24: #{discriminator_forward.1} parent=1 // pred_region
      %55 = vsyncadd [#allocation9], 0
      %s57 = sshll.u32 %s5, 4
      %s58 = int_to_ptr.hbm [resolvable:$true] %s57
      %s59 = sshll.u32 [#allocation10], 4
      %s60 = int_to_ptr.vmem [resolvable:$true] %s59
      %62 = dma.hbm_to_vmem [thread:$0]  %s58, 16, %s60, [#allocation9]
    $region25: #{discriminator_forward.1} parent=1 // pred_fallthru
      _
    // Predicated region
    $region26: #{discriminator_forward.1} parent=1 // pred_check
      _
    $region27: #{discriminator_forward.1} parent=1 // pred_check_branch
      %64 = sbr.rel (0) target = $region29
    $region28: #{discriminator_forward.1} parent=1 // pred_region
      %66 = vsyncadd [#allocation12], 0
      %s68 = sshll.u32 %s6, 4
      %s69 = int_to_ptr.hbm [resolvable:$true] %s68
      %s70 = sshll.u32 [#allocation11], 4
      %s71 = int_to_ptr.vmem [resolvable:$true] %s70
      %73 = dma.hbm_to_vmem [thread:$0]  %s69, 16, %s71, [#allocation12]
    $region29: #{discriminator_forward.1} parent=1 // pred_fallthru
      _
    // Predicated region
    $region30: #{discriminator_forward.1} parent=1 // pred_check
      _
    $region31: #{discriminator_forward.1} parent=1 // pred_check_branch
      %75 = sbr.rel (0) target = $region33
    $region32: #{discriminator_forward.1} parent=1 // pred_region
      _
    $region33: #{discriminator_forward.1} parent=1 // pred_fallthru
      _
    // Predicated region
    $region34: #{discriminator_forward.1} parent=1 // pred_check
      _
    $region35: #{discriminator_forward.1} parent=1 // pred_check_branch
      %77 = sbr.rel (0) target = $region37
    $region36: #{discriminator_forward.1} parent=1 // pred_region
      %79 = vsyncadd [#allocation12], 0
      %s81 = sshll.u32 %s8, 4
      %s82 = int_to_ptr.hbm [resolvable:$true] %s81
      %s83 = sshll.u32 [#allocation13], 4
      %s84 = int_to_ptr.vmem [resolvable:$true] %s83
      %86 = dma.hbm_to_vmem [thread:$0]  %s82, 16, %s84, [#allocation12]
    $region37: #{discriminator_forward.1} parent=1 // pred_fallthru
      _
    // Predicated region
    $region38: #{discriminator_forward.1} parent=1 // pred_check
      _
    $region39: #{discriminator_forward.1} parent=1 // pred_check_branch
      %88 = sbr.rel (0) target = $region41
    $region40: #{discriminator_forward.1} parent=1 // pred_region
      %90 = vsyncadd [#allocation15], 0
      %s92 = sshll.u32 %s9, 4
      %s93 = int_to_ptr.hbm [resolvable:$true] %s92
      %s94 = sshll.u32 [#allocation14], 4
      %s95 = int_to_ptr.vmem [resolvable:$true] %s94
      %97 = dma.hbm_to_vmem [thread:$0]  %s93, 16, %s95, [#allocation15]
    $region41: #{discriminator_forward.1} parent=1 // pred_fallthru
      _
    // Predicated region
    $region42: #{discriminator_forward.1} parent=1 // pred_check
      _
    $region43: #{discriminator_forward.1} parent=1 // pred_check_branch
      %99 = sbr.rel (0) target = $region45
    $region44: #{discriminator_forward.1} parent=1 // pred_region
      %101 = vsyncadd [#allocation15], 0
      %s103 = sshll.u32 %s10, 4
      %s104 = int_to_ptr.hbm [resolvable:$true] %s103
      %s105 = sshll.u32 [#allocation16], 4
      %s106 = int_to_ptr.vmem [resolvable:$true] %s105
      %108 = dma.hbm_to_vmem [thread:$0]  %s104, 16, %s106, [#allocation15]
    $region45: #{discriminator_forward.1} parent=1 // pred_fallthru
      _
    // Predicated region
    $region46: #{discriminator_forward.1} parent=1 // pred_check
      _
    $region47: #{discriminator_forward.1} parent=1 // pred_check_branch
      %110 = sbr.rel (0) target = $region49
    $region48: #{discriminator_forward.1} parent=1 // pred_region
      _
    $region49: #{discriminator_forward.1} parent=1 // pred_fallthru
      _
    // Predicated region
    $region50: #{discriminator_forward.1} parent=1 // pred_check
      _
    $region51: #{discriminator_forward.1} parent=1 // pred_check_branch
      %112 = sbr.rel (0) target = $region53
    $region52: #{discriminator_forward.1} parent=1 // pred_region
      _
    $region53: #{discriminator_forward.1} parent=1 // pred_fallthru
      _
    // Predicated region
    $region54: #{discriminator_forward.1} parent=1 // pred_check
      _
    $region55: #{discriminator_forward.1} parent=1 // pred_check_branch
      %114 = sbr.rel (0) target = $region57
    $region56: #{discriminator_forward.1} parent=1 // pred_region
      %116 = dma.done [#allocation7], 16
    $region57: #{discriminator_forward.1} parent=1 // pred_fallthru
      _
    // Predicated region
    $region58: #{discriminator_forward.1} parent=1 // pred_check
      _
    $region59: #{discriminator_forward.1} parent=1 // pred_check_branch
      %118 = sbr.rel (0) target = $region61
    $region60: #{discriminator_forward.1} parent=1 // pred_region
      %120 = dma.done [#allocation9], 16
    $region61: #{discriminator_forward.1} parent=1 // pred_fallthru
      _
    // Predicated region
    $region62: #{discriminator_forward.1} parent=1 // pred_check
      _
    $region63: #{discriminator_forward.1} parent=1 // pred_check_branch
      %122 = sbr.rel (0) target = $region65
    $region64: #{discriminator_forward.1} parent=1 // pred_region
      %124 = dma.done [#allocation9], 16
    $region65: #{discriminator_forward.1} parent=1 // pred_fallthru
      _
    // Predicated region
    $region66: #{discriminator_forward.1} parent=1 // pred_check
      _
    $region67: #{discriminator_forward.1} parent=1 // pred_check_branch
      %126 = sbr.rel (0) target = $region69
    $region68: #{discriminator_forward.1} parent=1 // pred_region
      %128 = dma.done [#allocation12], 16
    $region69: #{discriminator_forward.1} parent=1 // pred_fallthru
      _
    // Predicated region
    $region70: #{discriminator_forward.1} parent=1 // pred_check
      _
    $region71: #{discriminator_forward.1} parent=1 // pred_check_branch
      %130 = sbr.rel (0) target = $region73
    $region72: #{discriminator_forward.1} parent=1 // pred_region
      %132 = dma.done [#allocation12], 16
    $region73: #{discriminator_forward.1} parent=1 // pred_fallthru
      _
    // Predicated region
    $region74: #{discriminator_forward.1} parent=1 // pred_check
      _
    $region75: #{discriminator_forward.1} parent=1 // pred_check_branch
      %134 = sbr.rel (0) target = $region77
    $region76: #{discriminator_forward.1} parent=1 // pred_region
      %136 = dma.done [#allocation15], 16
    $region77: #{discriminator_forward.1} parent=1 // pred_fallthru
      _
    // Predicated region
    $region78: #{discriminator_forward.1} parent=1 // pred_check
      _
    $region79: #{discriminator_forward.1} parent=1 // pred_check_branch
      %138 = sbr.rel (0) target = $region81
    $region80: #{discriminator_forward.1} parent=1 // pred_region
      %140 = dma.done [#allocation15], 16
    $region81: #{discriminator_forward.1} parent=1 // pred_fallthru
      _
    %v142 = vld [vmem:[%s0] sm:$0x1]
    %v143 = vld [vmem:[%s0 + $0x1] sm:$0x1]
    %v144 = vld [vmem:[%s0 + $0x2] sm:$0x1]
    %v145 = vld [vmem:[%s0 + $0x3] sm:$0x1]
    %v146 = vld [vmem:[%s0 + $0x4] sm:$0x1]
    %v147 = vld [vmem:[%s0 + $0x5] sm:$0x1]
    %v148 = vld [vmem:[%s0 + $0x6] sm:$0x1]
    %v149 = vld [vmem:[%s0 + $0x7] sm:$0x1]
    %v150 = vld [vmem:[%s0 + $0x8] sm:$0x1]
    %v151 = vld [vmem:[%s0 + $0x9] sm:$0x1]
    %v152 = vld [vmem:[%s0 + $0xa] sm:$0x1]
    %v153 = vld [vmem:[%s0 + $0xb] sm:$0x1]
    %v154 = vld [vmem:[%s0 + $0xc] sm:$0x1]
    %v155 = vld [vmem:[%s0 + $0xd] sm:$0x1]
    %v156 = vld [vmem:[%s0 + $0xe] sm:$0x1]
    %v157 = vld [vmem:[%s0 + $0xf] sm:$0x1]
    %v158 = vld [vmem:[%s0 + $0x10] sm:$0x1]
    %v159 = vld [vmem:[%s0 + $0x11] sm:$0x1]
    %v160 = vld [vmem:[%s0 + $0x12] sm:$0x1]
    %v161 = vld [vmem:[%s0 + $0x13] sm:$0x1]
    %v162 = vld [vmem:[%s0 + $0x14] sm:$0x1]
    %v163 = vld [vmem:[%s0 + $0x15] sm:$0x1]
    %v164 = vld [vmem:[%s0 + $0x16] sm:$0x1]
    %v165 = vld [vmem:[%s0 + $0x17] sm:$0x1]
    %v166 = vld [vmem:[%s0 + $0x18] sm:$0x1]
    %v167 = vld [vmem:[%s0 + $0x19] sm:$0x1]
    %v168 = vld [vmem:[%s0 + $0x1a] sm:$0x1]
    %v169 = vld [vmem:[%s0 + $0x1b] sm:$0x1]
    %v170 = vld [vmem:[%s0 + $0x1c] sm:$0x1]
    %v171 = vld [vmem:[%s0 + $0x1d] sm:$0x1]
    %v172 = vld [vmem:[%s0 + $0x1e] sm:$0x1]
    %v173 = vld [vmem:[%s0 + $0x1f] sm:$0x1]
    %vm174 = vcmask 516096
    %175 = vst.msk [vmem:[#allocation2] sm:$0x1] %vm174, 0
    %176 = vst.msk [vmem:[#allocation2 + $0x1] sm:$0x1] %vm174, 0
    %s177 = scalar_lea.vmem [#allocation2], 2
    %178 = vst.msk [vmem:[%s177] sm:$0x1] %vm174, %v142
    %179 = vst.msk [vmem:[%s177 + $0x1] sm:$0x1] %vm174, %v143
    %180 = vst.msk [vmem:[%s177 + $0x2] sm:$0x1] %vm174, %v144
    %181 = vst.msk [vmem:[%s177 + $0x3] sm:$0x1] %vm174, %v145
    %182 = vst.msk [vmem:[%s177 + $0x4] sm:$0x1] %vm174, %v146
    %183 = vst.msk [vmem:[%s177 + $0x5] sm:$0x1] %vm174, %v147
    %184 = vst.msk [vmem:[%s177 + $0x6] sm:$0x1] %vm174, %v148
    %185 = vst.msk [vmem:[%s177 + $0x7] sm:$0x1] %vm174, %v149
    %186 = vst.msk [vmem:[%s177 + $0x8] sm:$0x1] %vm174, %v150
    %187 = vst.msk [vmem:[%s177 + $0x9] sm:$0x1] %vm174, %v151
    %188 = vst.msk [vmem:[%s177 + $0xa] sm:$0x1] %vm174, %v152
    %189 = vst.msk [vmem:[%s177 + $0xb] sm:$0x1] %vm174, %v153
    %190 = vst.msk [vmem:[%s177 + $0xc] sm:$0x1] %vm174, %v154
    %191 = vst.msk [vmem:[%s177 + $0xd] sm:$0x1] %vm174, %v155
    %192 = vst.msk [vmem:[%s177 + $0xe] sm:$0x1] %vm174, %v156
    %193 = vst.msk [vmem:[%s177 + $0xf] sm:$0x1] %vm174, %v157
    %194 = vst.msk [vmem:[%s177 + $0x10] sm:$0x1] %vm174, %v158
    %195 = vst.msk [vmem:[%s177 + $0x11] sm:$0x1] %vm174, %v159
    %196 = vst.msk [vmem:[%s177 + $0x12] sm:$0x1] %vm174, %v160
    %197 = vst.msk [vmem:[%s177 + $0x13] sm:$0x1] %vm174, %v161
    %198 = vst.msk [vmem:[%s177 + $0x14] sm:$0x1] %vm174, %v162
    %199 = vst.msk [vmem:[%s177 + $0x15] sm:$0x1] %vm174, %v163
    %200 = vst.msk [vmem:[%s177 + $0x16] sm:$0x1] %vm174, %v164
    %201 = vst.msk [vmem:[%s177 + $0x17] sm:$0x1] %vm174, %v165
    %202 = vst.msk [vmem:[%s177 + $0x18] sm:$0x1] %vm174, %v166
    %203 = vst.msk [vmem:[%s177 + $0x19] sm:$0x1] %vm174, %v167
    %204 = vst.msk [vmem:[%s177 + $0x1a] sm:$0x1] %vm174, %v168
    %205 = vst.msk [vmem:[%s177 + $0x1b] sm:$0x1] %vm174, %v169
    %206 = vst.msk [vmem:[%s177 + $0x1c] sm:$0x1] %vm174, %v170
    %207 = vst.msk [vmem:[%s177 + $0x1d] sm:$0x1] %vm174, %v171
    %208 = vst.msk [vmem:[%s177 + $0x1e] sm:$0x1] %vm174, %v172
    %209 = vst.msk [vmem:[%s177 + $0x1f] sm:$0x1] %vm174, %v173
    %s210 = scalar_lea.vmem [#allocation2], 34
    %211 = vst.msk [vmem:[%s210] sm:$0x1] %vm174, 0
    %212 = vst.msk [vmem:[%s210 + $0x1] sm:$0x1] %vm174, 0
    %v213 = vld [vmem:[#allocation2] sm:$0x1]
    %v214 = vld [vmem:[#allocation2 + $0x1] sm:$0x1]
    %v215 = vld [vmem:[#allocation2 + $0x2] sm:$0x1]
    %v216 = vld [vmem:[#allocation2 + $0x3] sm:$0x1]
    %v217 = vld [vmem:[#allocation2 + $0x4] sm:$0x1]
    %v218 = vld [vmem:[#allocation2 + $0x5] sm:$0x1]
    %v219 = vld [vmem:[#allocation2 + $0x6] sm:$0x1]
    %v220 = vld [vmem:[#allocation2 + $0x7] sm:$0x1]
    %v221 = vld [vmem:[#allocation2 + $0x8] sm:$0x1]
    %v222 = vld [vmem:[#allocation2 + $0x9] sm:$0x1]
    %v223 = vld [vmem:[#allocation2 + $0xa] sm:$0x1]
    %v224 = vld [vmem:[#allocation2 + $0xb] sm:$0x1]
    %v225 = vld [vmem:[#allocation2 + $0xc] sm:$0x1]
    %v226 = vld [vmem:[#allocation2 + $0xd] sm:$0x1]
    %v227 = vld [vmem:[#allocation2 + $0xe] sm:$0x1]
    %v228 = vld [vmem:[#allocation2 + $0xf] sm:$0x1]
    %v229 = vld [vmem:[#allocation2 + $0x10] sm:$0x1]
    %v230 = vld [vmem:[#allocation2 + $0x11] sm:$0x1]
    %v231 = vld [vmem:[#allocation2 + $0x12] sm:$0x1]
    %v232 = vld [vmem:[#allocation2 + $0x13] sm:$0x1]
    %v233 = vld [vmem:[#allocation2 + $0x14] sm:$0x1]
    %v234 = vld [vmem:[#allocation2 + $0x15] sm:$0x1]
    %v235 = vld [vmem:[#allocation2 + $0x16] sm:$0x1]
    %v236 = vld [vmem:[#allocation2 + $0x17] sm:$0x1]
    %v237 = vld [vmem:[#allocation2 + $0x18] sm:$0x1]
    %v238 = vld [vmem:[#allocation2 + $0x19] sm:$0x1]
    %v239 = vld [vmem:[#allocation2 + $0x1a] sm:$0x1]
    %v240 = vld [vmem:[#allocation2 + $0x1b] sm:$0x1]
    %v241 = vld [vmem:[#allocation2 + $0x1c] sm:$0x1]
    %v242 = vld [vmem:[#allocation2 + $0x1d] sm:$0x1]
    %v243 = vld [vmem:[#allocation2 + $0x1e] sm:$0x1]
    %v244 = vld [vmem:[#allocation2 + $0x1f] sm:$0x1]
    %v245 = vld [vmem:[#allocation2 + $0x20] sm:$0x1]
    %v246 = vld [vmem:[#allocation2 + $0x21] sm:$0x1]
    %v247 = vld [vmem:[#allocation2 + $0x22] sm:$0x1]
    %249 = vst [vmem:[#allocation1] ss:$9 sm:$0xff] %v214
    %v250 = vld [vmem:[#allocation1] sm:$0xff]
    %253 = vst [vmem:[#allocation1] ss:$9 sm:$0xff] %v216
    %v254 = vld [vmem:[#allocation1] sm:$0xff]
    %257 = vst [vmem:[#allocation1] ss:$9 sm:$0xff] %v218
    %v258 = vld [vmem:[#allocation1] sm:$0xff]
    %261 = vst [vmem:[#allocation1] ss:$9 sm:$0xff] %v220
    %v262 = vld [vmem:[#allocation1] sm:$0xff]
    %265 = vst [vmem:[#allocation1] ss:$9 sm:$0xff] %v222
    %v266 = vld [vmem:[#allocation1] sm:$0xff]
    %269 = vst [vmem:[#allocation1] ss:$9 sm:$0xff] %v224
    %v270 = vld [vmem:[#allocation1] sm:$0xff]
    %273 = vst [vmem:[#allocation1] ss:$9 sm:$0xff] %v226
    %v274 = vld [vmem:[#allocation1] sm:$0xff]
    %277 = vst [vmem:[#allocation1] ss:$9 sm:$0xff] %v228
    %v278 = vld [vmem:[#allocation1] sm:$0xff]
    %281 = vst [vmem:[#allocation1] ss:$9 sm:$0xff] %v230
    %v282 = vld [vmem:[#allocation1] sm:$0xff]
    %285 = vst [vmem:[#allocation1] ss:$9 sm:$0xff] %v232
    %v286 = vld [vmem:[#allocation1] sm:$0xff]
    %289 = vst [vmem:[#allocation1] ss:$9 sm:$0xff] %v234
    %v290 = vld [vmem:[#allocation1] sm:$0xff]
    %293 = vst [vmem:[#allocation1] ss:$9 sm:$0xff] %v236
    %v294 = vld [vmem:[#allocation1] sm:$0xff]
    %297 = vst [vmem:[#allocation1] ss:$9 sm:$0xff] %v238
    %v298 = vld [vmem:[#allocation1] sm:$0xff]
    %301 = vst [vmem:[#allocation1] ss:$9 sm:$0xff] %v240
    %v302 = vld [vmem:[#allocation1] sm:$0xff]
    %305 = vst [vmem:[#allocation1] ss:$9 sm:$0xff] %v242
    %v306 = vld [vmem:[#allocation1] sm:$0xff]
    %309 = vst [vmem:[#allocation1] ss:$9 sm:$0xff] %v244
    %v310 = vld [vmem:[#allocation1] sm:$0xff]
    %312 = vrot.lane.b32.xlu0 %v250, 64
    %v313 = vpop.permute.xlu0 %312
    %314 = vrot.lane.b32.xlu0 %v254, 64
    %v315 = vpop.permute.xlu0 %314
    %316 = vrot.lane.b32.xlu0 %v258, 64
    %v317 = vpop.permute.xlu0 %316
    %318 = vrot.lane.b32.xlu0 %v262, 64
    %v319 = vpop.permute.xlu0 %318
    %320 = vrot.lane.b32.xlu0 %v266, 64
    %v321 = vpop.permute.xlu0 %320
    %322 = vrot.lane.b32.xlu0 %v270, 64
    %v323 = vpop.permute.xlu0 %322
    %324 = vrot.lane.b32.xlu0 %v274, 64
    %v325 = vpop.permute.xlu0 %324
    %326 = vrot.lane.b32.xlu0 %v278, 64
    %v327 = vpop.permute.xlu0 %326
    %328 = vrot.lane.b32.xlu0 %v282, 64
    %v329 = vpop.permute.xlu0 %328
    %330 = vrot.lane.b32.xlu0 %v286, 64
    %v331 = vpop.permute.xlu0 %330
    %332 = vrot.lane.b32.xlu0 %v290, 64
    %v333 = vpop.permute.xlu0 %332
    %334 = vrot.lane.b32.xlu0 %v294, 64
    %v335 = vpop.permute.xlu0 %334
    %336 = vrot.lane.b32.xlu0 %v298, 64
    %v337 = vpop.permute.xlu0 %336
    %338 = vrot.lane.b32.xlu0 %v302, 64
    %v339 = vpop.permute.xlu0 %338
    %340 = vrot.lane.b32.xlu0 %v306, 64
    %v341 = vpop.permute.xlu0 %340
    %342 = vrot.lane.b32.xlu0 %v310, 64
    %v343 = vpop.permute.xlu0 %342
    %344 = vst [vmem:[#allocation1] ss:$9 sm:$0xff] %v216
    %v345 = vld [vmem:[#allocation1] sm:$0xff]
    %347 = vst [vmem:[#allocation1] ss:$9 sm:$0xff] %v218
    %v348 = vld [vmem:[#allocation1] sm:$0xff]
    %350 = vst [vmem:[#allocation1] ss:$9 sm:$0xff] %v220
    %v351 = vld [vmem:[#allocation1] sm:$0xff]
    %353 = vst [vmem:[#allocation1] ss:$9 sm:$0xff] %v222
    %v354 = vld [vmem:[#allocation1] sm:$0xff]
    %356 = vst [vmem:[#allocation1] ss:$9 sm:$0xff] %v224
    %v357 = vld [vmem:[#allocation1] sm:$0xff]
    %359 = vst [vmem:[#allocation1] ss:$9 sm:$0xff] %v226
    %v360 = vld [vmem:[#allocation1] sm:$0xff]
    %362 = vst [vmem:[#allocation1] ss:$9 sm:$0xff] %v228
    %v363 = vld [vmem:[#allocation1] sm:$0xff]
    %365 = vst [vmem:[#allocation1] ss:$9 sm:$0xff] %v230
    %v366 = vld [vmem:[#allocation1] sm:$0xff]
    %368 = vst [vmem:[#allocation1] ss:$9 sm:$0xff] %v232
    %v369 = vld [vmem:[#allocation1] sm:$0xff]
    %371 = vst [vmem:[#allocation1] ss:$9 sm:$0xff] %v234
    %v372 = vld [vmem:[#allocation1] sm:$0xff]
    %374 = vst [vmem:[#allocation1] ss:$9 sm:$0xff] %v236
    %v375 = vld [vmem:[#allocation1] sm:$0xff]
    %377 = vst [vmem:[#allocation1] ss:$9 sm:$0xff] %v238
    %v378 = vld [vmem:[#allocation1] sm:$0xff]
    %380 = vst [vmem:[#allocation1] ss:$9 sm:$0xff] %v240
    %v381 = vld [vmem:[#allocation1] sm:$0xff]
    %383 = vst [vmem:[#allocation1] ss:$9 sm:$0xff] %v242
    %v384 = vld [vmem:[#allocation1] sm:$0xff]
    %386 = vst [vmem:[#allocation1] ss:$9 sm:$0xff] %v244
    %v387 = vld [vmem:[#allocation1] sm:$0xff]
    %390 = vst [vmem:[#allocation1] ss:$9 sm:$0xff] %v246
    %v391 = vld [vmem:[#allocation1] sm:$0xff]
    %393 = vrot.lane.b32.xlu0 %v345, 64
    %v394 = vpop.permute.xlu0 %393
    %395 = vrot.lane.b32.xlu0 %v348, 64
    %v396 = vpop.permute.xlu0 %395
    %397 = vrot.lane.b32.xlu0 %v351, 64
    %v398 = vpop.permute.xlu0 %397
    %399 = vrot.lane.b32.xlu0 %v354, 64
    %v400 = vpop.permute.xlu0 %399
    %401 = vrot.lane.b32.xlu0 %v357, 64
    %v402 = vpop.permute.xlu0 %401
    %403 = vrot.lane.b32.xlu0 %v360, 64
    %v404 = vpop.permute.xlu0 %403
    %405 = vrot.lane.b32.xlu0 %v363, 64
    %v406 = vpop.permute.xlu0 %405
    %407 = vrot.lane.b32.xlu0 %v366, 64
    %v408 = vpop.permute.xlu0 %407
    %409 = vrot.lane.b32.xlu0 %v369, 64
    %v410 = vpop.permute.xlu0 %409
    %411 = vrot.lane.b32.xlu0 %v372, 64
    %v412 = vpop.permute.xlu0 %411
    %413 = vrot.lane.b32.xlu0 %v375, 64
    %v414 = vpop.permute.xlu0 %413
    %415 = vrot.lane.b32.xlu0 %v378, 64
    %v416 = vpop.permute.xlu0 %415
    %417 = vrot.lane.b32.xlu0 %v381, 64
    %v418 = vpop.permute.xlu0 %417
    %419 = vrot.lane.b32.xlu0 %v384, 64
    %v420 = vpop.permute.xlu0 %419
    %421 = vrot.lane.b32.xlu0 %v387, 64
    %v422 = vpop.permute.xlu0 %421
    %423 = vrot.lane.b32.xlu0 %v391, 64
    %v424 = vpop.permute.xlu0 %423
    %vm425 = vcmask 523264
    %v428 = vsel %vm425, %v213, %v313
    %v431 = vsel %vm425, %v215, %v315
    %v434 = vsel %vm425, %v217, %v317
    %v437 = vsel %vm425, %v219, %v319
    %v440 = vsel %vm425, %v221, %v321
    %v443 = vsel %vm425, %v223, %v323
    %v446 = vsel %vm425, %v225, %v325
    %v449 = vsel %vm425, %v227, %v327
    %v452 = vsel %vm425, %v229, %v329
    %v455 = vsel %vm425, %v231, %v331
    %v458 = vsel %vm425, %v233, %v333
    %v461 = vsel %vm425, %v235, %v335
    %v464 = vsel %vm425, %v237, %v337
    %v467 = vsel %vm425, %v239, %v339
    %v470 = vsel %vm425, %v241, %v341
    %v473 = vsel %vm425, %v243, %v343
    %v475 = vsel %vm425, %v215, %v394
    %v477 = vsel %vm425, %v217, %v396
    %v479 = vsel %vm425, %v219, %v398
    %v481 = vsel %vm425, %v221, %v400
    %v483 = vsel %vm425, %v223, %v402
    %v485 = vsel %vm425, %v225, %v404
    %v487 = vsel %vm425, %v227, %v406
    %v489 = vsel %vm425, %v229, %v408
    %v491 = vsel %vm425, %v231, %v410
    %v493 = vsel %vm425, %v233, %v412
    %v495 = vsel %vm425, %v235, %v414
    %v497 = vsel %vm425, %v237, %v416
    %v499 = vsel %vm425, %v239, %v418
    %v501 = vsel %vm425, %v241, %v420
    %v503 = vsel %vm425, %v243, %v422
    %v506 = vsel %vm425, %v245, %v424
    %v539 = vrot.slane %v475, 7
    %v540 = vrot.slane %v217, 6
    %v541 = vrot.slane %v477, 7
    %v542 = vrot.slane %v219, 6
    %v543 = vrot.slane %v479, 7
    %v544 = vrot.slane %v221, 6
    %v545 = vrot.slane %v481, 7
    %v546 = vrot.slane %v223, 6
    %v547 = vrot.slane %v483, 7
    %v548 = vrot.slane %v225, 6
    %v549 = vrot.slane %v485, 7
    %v550 = vrot.slane %v227, 6
    %v551 = vrot.slane %v487, 7
    %v552 = vrot.slane %v229, 6
    %v553 = vrot.slane %v489, 7
    %v554 = vrot.slane %v231, 6
    %v555 = vrot.slane %v491, 7
    %v556 = vrot.slane %v233, 6
    %v557 = vrot.slane %v493, 7
    %v558 = vrot.slane %v235, 6
    %v559 = vrot.slane %v495, 7
    %v560 = vrot.slane %v237, 6
    %v561 = vrot.slane %v497, 7
    %v562 = vrot.slane %v239, 6
    %v563 = vrot.slane %v499, 7
    %v564 = vrot.slane %v241, 6
    %v565 = vrot.slane %v501, 7
    %v566 = vrot.slane %v243, 6
    %v567 = vrot.slane %v503, 7
    %v568 = vrot.slane %v245, 6
    %v569 = vrot.slane %v506, 7
    %v570 = vrot.slane %v247, 6
    %vm571 = vcmask 1040384
    %v573 = vsel %vm571, %v428, %v539
    %vm574 = vcmask 1041408
    %v576 = vsel %vm574, %v573, %v540
    %v578 = vsel %vm571, %v431, %v541
    %v580 = vsel %vm574, %v578, %v542
    %v582 = vsel %vm571, %v434, %v543
    %v584 = vsel %vm574, %v582, %v544
    %v586 = vsel %vm571, %v437, %v545
    %v588 = vsel %vm574, %v586, %v546
    %v590 = vsel %vm571, %v440, %v547
    %v592 = vsel %vm574, %v590, %v548
    %v594 = vsel %vm571, %v443, %v549
    %v596 = vsel %vm574, %v594, %v550
    %v598 = vsel %vm571, %v446, %v551
    %v600 = vsel %vm574, %v598, %v552
    %v602 = vsel %vm571, %v449, %v553
    %v604 = vsel %vm574, %v602, %v554
    %v606 = vsel %vm571, %v452, %v555
    %v608 = vsel %vm574, %v606, %v556
    %v610 = vsel %vm571, %v455, %v557
    %v612 = vsel %vm574, %v610, %v558
    %v614 = vsel %vm571, %v458, %v559
    %v616 = vsel %vm574, %v614, %v560
    %v618 = vsel %vm571, %v461, %v561
    %v620 = vsel %vm574, %v618, %v562
    %v622 = vsel %vm571, %v464, %v563
    %v624 = vsel %vm574, %v622, %v564
    %v626 = vsel %vm571, %v467, %v565
    %v628 = vsel %vm574, %v626, %v566
    %v630 = vsel %vm571, %v470, %v567
    %v632 = vsel %vm574, %v630, %v568
    %v634 = vsel %vm571, %v473, %v569
    %v636 = vsel %vm574, %v634, %v570
    %v637 = vld [vmem:[%s1] sm:$0xf]
    %v638 = vld [vmem:[%s1 + $0x4] sm:$0xf]
    %v639 = vld [vmem:[%s1 + $0x8] sm:$0xf]
    %v640 = vld [vmem:[%s1 + $0xc] sm:$0xf]
    %v641 = vld [vmem:[%s1 + $0x10] sm:$0xf]
    %v642 = vld [vmem:[%s1 + $0x14] sm:$0xf]
    %v643 = vld [vmem:[%s1 + $0x18] sm:$0xf]
    %v644 = vld [vmem:[%s1 + $0x1c] sm:$0xf]
    %v645 = vld [vmem:[%s1 + $0x20] sm:$0xf]
    %v646 = vld [vmem:[%s1 + $0x24] sm:$0xf]
    %v647 = vld [vmem:[%s1 + $0x28] sm:$0xf]
    %v648 = vld [vmem:[%s1 + $0x2c] sm:$0xf]
    %v649 = vld [vmem:[%s1 + $0x30] sm:$0xf]
    %v650 = vld [vmem:[%s1 + $0x34] sm:$0xf]
    %v651 = vld [vmem:[%s1 + $0x38] sm:$0xf]
    %v652 = vld [vmem:[%s1 + $0x3c] sm:$0xf]
    %v653 = vld [vmem:[%s1 + $0x40] sm:$0xf]
    %v654 = vld [vmem:[%s1 + $0x44] sm:$0xf]
    %v655 = vld [vmem:[%s1 + $0x48] sm:$0xf]
    %v656 = vld [vmem:[%s1 + $0x4c] sm:$0xf]
    %v657 = vld [vmem:[%s1 + $0x50] sm:$0xf]
    %v658 = vld [vmem:[%s1 + $0x54] sm:$0xf]
    %v659 = vld [vmem:[%s1 + $0x58] sm:$0xf]
    %v660 = vld [vmem:[%s1 + $0x5c] sm:$0xf]
    %v661 = vld [vmem:[%s1 + $0x60] sm:$0xf]
    %v662 = vld [vmem:[%s1 + $0x64] sm:$0xf]
    %v663 = vld [vmem:[%s1 + $0x68] sm:$0xf]
    %v664 = vld [vmem:[%s1 + $0x6c] sm:$0xf]
    %v665 = vld [vmem:[%s1 + $0x70] sm:$0xf]
    %v666 = vld [vmem:[%s1 + $0x74] sm:$0xf]
    %v667 = vld [vmem:[%s1 + $0x78] sm:$0xf]
    %v668 = vld [vmem:[%s1 + $0x7c] sm:$0xf]
    %v669 = vld [vmem:[%s1 + $0x80] sm:$0xf]
    %v670 = vld [vmem:[%s1 + $0x84] sm:$0xf]
    %v671 = vld [vmem:[%s1 + $0x88] sm:$0xf]
    %v672 = vld [vmem:[%s1 + $0x8c] sm:$0xf]
    %v673 = vld [vmem:[%s1 + $0x90] sm:$0xf]
    %v674 = vld [vmem:[%s1 + $0x94] sm:$0xf]
    %v675 = vld [vmem:[%s1 + $0x98] sm:$0xf]
    %v676 = vld [vmem:[%s1 + $0x9c] sm:$0xf]
    %v677 = vld [vmem:[#allocation6] sm:$0x1]
    %v679 = vperm.slane %v677, 0
    %681 = vst [vmem:[#allocation1] ss:$9 sm:$0xff] %v576
    %s682 = scalar_lea.vmem [#allocation1], 1
    %683 = vst [vmem:[%s682] ss:$9 sm:$0xff] %v580
    %s684 = scalar_lea.vmem [#allocation1], 2
    %685 = vst [vmem:[%s684] ss:$9 sm:$0xff] %v584
    %s686 = scalar_lea.vmem [#allocation1], 3
    %687 = vst [vmem:[%s686] ss:$9 sm:$0xff] %v588
    %s688 = scalar_lea.vmem [#allocation1], 4
    %689 = vst [vmem:[%s688] ss:$9 sm:$0xff] %v592
    %s690 = scalar_lea.vmem [#allocation1], 5
    %691 = vst [vmem:[%s690] ss:$9 sm:$0xff] %v596
    %s692 = scalar_lea.vmem [#allocation1], 6
    %693 = vst [vmem:[%s692] ss:$9 sm:$0xff] %v600
    %s694 = scalar_lea.vmem [#allocation1], 7
    %695 = vst [vmem:[%s694] ss:$9 sm:$0xff] %v604
    %v696 = vld [vmem:[#allocation1] sm:$0xff]
    %v697 = vld [vmem:[#allocation1 + $0x9] sm:$0xff]
    %v698 = vld [vmem:[#allocation1 + $0x12] sm:$0xff]
    %699 = vst [vmem:[#allocation1] ss:$9 sm:$0xff] %v608
    %700 = vst [vmem:[%s682] ss:$9 sm:$0xff] %v612
    %701 = vst [vmem:[%s684] ss:$9 sm:$0xff] %v616
    %702 = vst [vmem:[%s686] ss:$9 sm:$0xff] %v620
    %703 = vst [vmem:[%s688] ss:$9 sm:$0xff] %v624
    %704 = vst [vmem:[%s690] ss:$9 sm:$0xff] %v628
    %705 = vst [vmem:[%s692] ss:$9 sm:$0xff] %v632
    %706 = vst [vmem:[%s694] ss:$9 sm:$0xff] %v636
    %v707 = vld [vmem:[#allocation1] sm:$0xff]
    %v708 = vld [vmem:[#allocation1 + $0x9] sm:$0xff]
    %v709 = vld [vmem:[#allocation1 + $0x12] sm:$0xff]
    %v754 = vunpack.c.l.b16 %v637
    %v755 = vunpack.c.l.b16 %v638
    %v756 = vunpack.c.l.b16 %v639
    %v757 = vunpack.c.l.b16 %v640
    %v758 = vunpack.c.l.b16 %v641
    %v759 = vunpack.c.l.b16 %v642
    %v760 = vunpack.c.l.b16 %v643
    %v761 = vunpack.c.l.b16 %v644
    %v762 = vunpack.c.l.b16 %v645
    %v763 = vunpack.c.l.b16 %v646
    %v764 = vunpack.c.l.b16 %v647
    %v765 = vunpack.c.l.b16 %v648
    %v766 = vunpack.c.l.b16 %v649
    %v767 = vunpack.c.l.b16 %v650
    %v768 = vunpack.c.l.b16 %v651
    %v769 = vunpack.c.l.b16 %v652
    %v770 = vunpack.c.l.b16 %v653
    %v771 = vunpack.c.l.b16 %v654
    %v772 = vunpack.c.l.b16 %v655
    %v773 = vunpack.c.l.b16 %v656
    %v774 = vunpack.c.l.b16 %v657
    %v775 = vunpack.c.l.b16 %v658
    %v776 = vunpack.c.l.b16 %v659
    %v777 = vunpack.c.l.b16 %v660
    %v778 = vunpack.c.l.b16 %v661
    %v779 = vunpack.c.l.b16 %v662
    %v780 = vunpack.c.l.b16 %v663
    %v781 = vunpack.c.l.b16 %v664
    %v782 = vunpack.c.l.b16 %v665
    %v783 = vunpack.c.l.b16 %v666
    %v784 = vunpack.c.l.b16 %v667
    %v785 = vunpack.c.l.b16 %v668
    %v786 = vunpack.c.l.b16 %v669
    %v787 = vunpack.c.l.b16 %v670
    %v788 = vunpack.c.l.b16 %v671
    %v789 = vunpack.c.l.b16 %v672
    %v790 = vunpack.c.l.b16 %v673
    %v791 = vunpack.c.l.b16 %v674
    %v792 = vunpack.c.l.b16 %v675
    %v793 = vunpack.c.l.b16 %v676
    %v794 = vpack.c.b16 %v755, %v754
    %v795 = vpack.c.b16 %v757, %v756
    %v796 = vpack.c.b16 %v759, %v758
    %v797 = vpack.c.b16 %v761, %v760
    %v798 = vpack.c.b16 %v763, %v762
    %v799 = vpack.c.b16 %v765, %v764
    %v800 = vpack.c.b16 %v767, %v766
    %v801 = vpack.c.b16 %v769, %v768
    %v802 = vpack.c.b16 %v771, %v770
    %v803 = vpack.c.b16 %v773, %v772
    %v804 = vpack.c.b16 %v775, %v774
    %v805 = vpack.c.b16 %v777, %v776
    %v806 = vpack.c.b16 %v779, %v778
    %v807 = vpack.c.b16 %v781, %v780
    %v808 = vpack.c.b16 %v783, %v782
    %v809 = vpack.c.b16 %v785, %v784
    %v810 = vpack.c.b16 %v787, %v786
    %v811 = vpack.c.b16 %v789, %v788
    %v812 = vpack.c.b16 %v791, %v790
    %v813 = vpack.c.b16 %v793, %v792
    %v834 = vsel %vm425, %v698, 0
    %v836 = vsel %vm425, %v709, 0
    %838 = vmatpush.bf16.msra.mxu0 %v801
    %839 = vmatpush.bf16.msra.mxu0 %v800
    %840 = vmatpush.bf16.msra.mxu0 %v799
    %841 = vmatpush.bf16.msra.mxu0 %v798
    %842 = vmatpush.bf16.msra.mxu0 %v797
    %843 = vmatpush.bf16.msra.mxu0 %v796
    %844 = vmatpush.bf16.msra.mxu0 %v795
    %845 = vmatpush.bf16.msra.mxu0 %v794
    %846 = vmatmul.bf16.gmra.mxu0 %v696
    %v847 = vpop.f32.mrf.mxu0
    %v848 = vadd.f32 %v679, %v847
    %v849 = vpop.f32.mrf.mxu0
    %v850 = vadd.f32 %v679, %v849
    %851 = vmatmul.bf16.gmra.mxu0 %v707
    %v852 = vpop.f32.mrf.mxu0
    %v853 = vadd.f32 %v679, %v852
    %v854 = vpop.f32.mrf.mxu0
    %v855 = vadd.f32 %v679, %v854
    %856 = vdwg.mxu0
    %857 = vmatpush.bf16.msra.mxu0 %v809
    %858 = vmatpush.bf16.msra.mxu0 %v808
    %859 = vmatpush.bf16.msra.mxu0 %v807
    %860 = vmatpush.bf16.msra.mxu0 %v806
    %861 = vmatpush.bf16.msra.mxu0 %v805
    %862 = vmatpush.bf16.msra.mxu0 %v804
    %863 = vmatpush.bf16.msra.mxu0 %v803
    %864 = vmatpush.bf16.msra.mxu0 %v802
    %865 = vmatmul.bf16.gmra.mxu0 %v697
    %v866 = vpop.f32.mrf.mxu0
    %v867 = vadd.f32 %v848, %v866
    %v868 = vpop.f32.mrf.mxu0
    %v869 = vadd.f32 %v850, %v868
    %870 = vmatmul.bf16.gmra.mxu0 %v708
    %v871 = vpop.f32.mrf.mxu0
    %v872 = vadd.f32 %v853, %v871
    %v873 = vpop.f32.mrf.mxu0
    %v874 = vadd.f32 %v855, %v873
    %875 = vdwg.mxu0
    %876 = vmatpush.bf16.msra.mxu0 0
    %877 = vmatpush.bf16.msra.mxu0 0
    %878 = vmatpush.bf16.msra.mxu0 0
    %879 = vmatpush.bf16.msra.mxu0 0
    %880 = vmatpush.bf16.msra.mxu0 %v813
    %881 = vmatpush.bf16.msra.mxu0 %v812
    %882 = vmatpush.bf16.msra.mxu0 %v811
    %883 = vmatpush.bf16.msra.mxu0 %v810
    %884 = vmatmul.bf16.gmra.mxu0 %v834
    %v885 = vpop.f32.mrf.mxu0
    %v886 = vadd.f32 %v867, %v885
    %v887 = vpop.f32.mrf.mxu0
    %v888 = vadd.f32 %v869, %v887
    %889 = vmatmul.bf16.gmra.mxu0 %v836
    %v890 = vpop.f32.mrf.mxu0
    %v891 = vadd.f32 %v872, %v890
    %v892 = vpop.f32.mrf.mxu0
    %v893 = vadd.f32 %v874, %v892
    %894 = vdwg.mxu0
    %vm895 = vcmp.ge.f32.partialorder %v886, 0.0
    %vm896 = vcmp.ge.f32.partialorder %v888, 0.0
    %vm897 = vcmp.ge.f32.partialorder %v891, 0.0
    %vm898 = vcmp.ge.f32.partialorder %v893, 0.0
    %v899 = vmul.f32 %v886, 0.2
    %v900 = vmul.f32 %v888, 0.2
    %v901 = vmul.f32 %v891, 0.2
    %v902 = vmul.f32 %v893, 0.2
    %v903 = vsel %vm895, %v886, %v899
    %v904 = vsel %vm896, %v888, %v900
    %v905 = vsel %vm897, %v891, %v901
    %v906 = vsel %vm898, %v893, %v902
    %v907 = vpack.c.bf16 %v903, %v903
    %v908 = vpack.c.bf16 %v904, %v904
    %v909 = vpack.c.bf16 %v905, %v905
    %v910 = vpack.c.bf16 %v906, %v906
    %v915 = vrot.slane %v907, 3
    %v916 = vrot.slane %v908, 3
    %v917 = vrot.slane %v909, 3
    %v918 = vrot.slane %v910, 3
    %v921 = vsel %vm571, %v907, %v915
    %vm922 = vcmask 1041409
    %v923 = vsel %vm922, %v907, %v915
    %v925 = vrot.slane %v923, 1
    %vm926 = vcmask 1042434
    %v927 = vsel %vm926, %v907, %v915
    %v929 = vrot.slane %v927, 2
    %vm930 = vcmask 1043459
    %v931 = vsel %vm930, %v907, %v915
    %v933 = vrot.slane %v931, 3
    %v936 = vsel %vm571, %v908, %v916
    %v937 = vsel %vm922, %v908, %v916
    %v939 = vrot.slane %v937, 1
    %v940 = vsel %vm926, %v908, %v916
    %v942 = vrot.slane %v940, 2
    %v943 = vsel %vm930, %v908, %v916
    %v945 = vrot.slane %v943, 3
    %v948 = vsel %vm571, %v909, %v917
    %v949 = vsel %vm922, %v909, %v917
    %v951 = vrot.slane %v949, 1
    %v952 = vsel %vm926, %v909, %v917
    %v954 = vrot.slane %v952, 2
    %v955 = vsel %vm930, %v909, %v917
    %v957 = vrot.slane %v955, 3
    %v960 = vsel %vm571, %v910, %v918
    %v961 = vsel %vm922, %v910, %v918
    %v963 = vrot.slane %v961, 1
    %v964 = vsel %vm926, %v910, %v918
    %v966 = vrot.slane %v964, 2
    %v967 = vsel %vm930, %v910, %v918
    %v969 = vrot.slane %v967, 3
    %986 = vst [vmem:[#allocation3] sm:$0x1] 0
    %987 = vst [vmem:[#allocation3 + $0x1] sm:$0x1] 0
    %s988 = scalar_lea.vmem [#allocation3], 2
    %989 = vst [vmem:[%s988] sm:$0x1] %v921
    %990 = vst [vmem:[%s988 + $0x1] sm:$0x1] %v925
    %991 = vst [vmem:[%s988 + $0x2] sm:$0x1] %v929
    %992 = vst [vmem:[%s988 + $0x3] sm:$0x1] %v933
    %993 = vst [vmem:[%s988 + $0x4] sm:$0x1] %v936
    %994 = vst [vmem:[%s988 + $0x5] sm:$0x1] %v939
    %995 = vst [vmem:[%s988 + $0x6] sm:$0x1] %v942
    %996 = vst [vmem:[%s988 + $0x7] sm:$0x1] %v945
    %997 = vst [vmem:[%s988 + $0x8] sm:$0x1] %v948
    %998 = vst [vmem:[%s988 + $0x9] sm:$0x1] %v951
    %999 = vst [vmem:[%s988 + $0xa] sm:$0x1] %v954
    %1000 = vst [vmem:[%s988 + $0xb] sm:$0x1] %v957
    %1001 = vst [vmem:[%s988 + $0xc] sm:$0x1] %v960
    %1002 = vst [vmem:[%s988 + $0xd] sm:$0x1] %v963
    %1003 = vst [vmem:[%s988 + $0xe] sm:$0x1] %v966
    %1004 = vst [vmem:[%s988 + $0xf] sm:$0x1] %v969
    %s1005 = scalar_lea.vmem [#allocation3], 18
    %1006 = vst [vmem:[%s1005] sm:$0x1] 0
    %1007 = vst [vmem:[%s1005 + $0x1] sm:$0x1] 0
    %v1008 = vld [vmem:[#allocation3] sm:$0x1]
    %v1009 = vld [vmem:[#allocation3 + $0x1] sm:$0x1]
    %v1010 = vld [vmem:[#allocation3 + $0x2] sm:$0x1]
    %v1011 = vld [vmem:[#allocation3 + $0x3] sm:$0x1]
    %v1012 = vld [vmem:[#allocation3 + $0x4] sm:$0x1]
    %v1013 = vld [vmem:[#allocation3 + $0x5] sm:$0x1]
    %v1014 = vld [vmem:[#allocation3 + $0x6] sm:$0x1]
    %v1015 = vld [vmem:[#allocation3 + $0x7] sm:$0x1]
    %v1016 = vld [vmem:[#allocation3 + $0x8] sm:$0x1]
    %v1017 = vld [vmem:[#allocation3 + $0x9] sm:$0x1]
    %v1018 = vld [vmem:[#allocation3 + $0xa] sm:$0x1]
    %v1019 = vld [vmem:[#allocation3 + $0xb] sm:$0x1]
    %v1020 = vld [vmem:[#allocation3 + $0xc] sm:$0x1]
    %v1021 = vld [vmem:[#allocation3 + $0xd] sm:$0x1]
    %v1022 = vld [vmem:[#allocation3 + $0xe] sm:$0x1]
    %v1023 = vld [vmem:[#allocation3 + $0xf] sm:$0x1]
    %v1024 = vld [vmem:[#allocation3 + $0x10] sm:$0x1]
    %v1025 = vld [vmem:[#allocation3 + $0x11] sm:$0x1]
    %v1026 = vld [vmem:[#allocation3 + $0x12] sm:$0x1]
    %v1045 = vrot.slane %v1009, 7
    %v1046 = vrot.slane %v1010, 6
    %v1047 = vrot.slane %v1011, 5
    %v1048 = vrot.slane %v1012, 4
    %v1049 = vrot.slane %v1011, 7
    %v1050 = vrot.slane %v1012, 6
    %v1051 = vrot.slane %v1013, 5
    %v1052 = vrot.slane %v1014, 4
    %v1053 = vrot.slane %v1013, 7
    %v1054 = vrot.slane %v1014, 6
    %v1055 = vrot.slane %v1015, 5
    %v1056 = vrot.slane %v1016, 4
    %v1057 = vrot.slane %v1015, 7
    %v1058 = vrot.slane %v1016, 6
    %v1059 = vrot.slane %v1017, 5
    %v1060 = vrot.slane %v1018, 4
    %v1061 = vrot.slane %v1017, 7
    %v1062 = vrot.slane %v1018, 6
    %v1063 = vrot.slane %v1019, 5
    %v1064 = vrot.slane %v1020, 4
    %v1065 = vrot.slane %v1019, 7
    %v1066 = vrot.slane %v1020, 6
    %v1067 = vrot.slane %v1021, 5
    %v1068 = vrot.slane %v1022, 4
    %v1069 = vrot.slane %v1021, 7
    %v1070 = vrot.slane %v1022, 6
    %v1071 = vrot.slane %v1023, 5
    %v1072 = vrot.slane %v1024, 4
    %v1073 = vrot.slane %v1023, 7
    %v1074 = vrot.slane %v1024, 6
    %v1075 = vrot.slane %v1025, 5
    %v1076 = vrot.slane %v1026, 4
    %v1079 = vsel %vm571, %v1008, %v1045
    %v1081 = vsel %vm574, %v1079, %v1046
    %v1084 = vsel %vm930, %v1047, %v1048
    %vm1085 = vcmask 1042432
    %v1086 = vsel %vm1085, %v1081, %v1084
    %v1089 = vsel %vm571, %v1010, %v1049
    %v1091 = vsel %vm574, %v1089, %v1050
    %v1094 = vsel %vm930, %v1051, %v1052
    %v1095 = vsel %vm1085, %v1091, %v1094
    %v1098 = vsel %vm571, %v1012, %v1053
    %v1100 = vsel %vm574, %v1098, %v1054
    %v1103 = vsel %vm930, %v1055, %v1056
    %v1104 = vsel %vm1085, %v1100, %v1103
    %v1107 = vsel %vm571, %v1014, %v1057
    %v1109 = vsel %vm574, %v1107, %v1058
    %v1112 = vsel %vm930, %v1059, %v1060
    %v1113 = vsel %vm1085, %v1109, %v1112
    %v1116 = vsel %vm571, %v1016, %v1061
    %v1118 = vsel %vm574, %v1116, %v1062
    %v1121 = vsel %vm930, %v1063, %v1064
    %v1122 = vsel %vm1085, %v1118, %v1121
    %v1125 = vsel %vm571, %v1018, %v1065
    %v1127 = vsel %vm574, %v1125, %v1066
    %v1130 = vsel %vm930, %v1067, %v1068
    %v1131 = vsel %vm1085, %v1127, %v1130
    %v1134 = vsel %vm571, %v1020, %v1069
    %v1136 = vsel %vm574, %v1134, %v1070
    %v1139 = vsel %vm930, %v1071, %v1072
    %v1140 = vsel %vm1085, %v1136, %v1139
    %v1143 = vsel %vm571, %v1022, %v1073
    %v1145 = vsel %vm574, %v1143, %v1074
    %v1148 = vsel %vm930, %v1075, %v1076
    %v1149 = vsel %vm1085, %v1145, %v1148
    %v1150 = vld [vmem:[%s3] sm:$0xf]
    %v1151 = vld [vmem:[%s3 + $0x4] sm:$0xf]
    %v1152 = vld [vmem:[%s3 + $0x8] sm:$0xf]
    %v1153 = vld [vmem:[%s3 + $0xc] sm:$0xf]
    %v1154 = vld [vmem:[%s3 + $0x10] sm:$0xf]
    %v1155 = vld [vmem:[%s3 + $0x14] sm:$0xf]
    %v1156 = vld [vmem:[%s3 + $0x18] sm:$0xf]
    %v1157 = vld [vmem:[%s3 + $0x1c] sm:$0xf]
    %v1158 = vld [vmem:[%s3 + $0x20] sm:$0xf]
    %v1159 = vld [vmem:[%s3 + $0x24] sm:$0xf]
    %v1160 = vld [vmem:[%s3 + $0x28] sm:$0xf]
    %v1161 = vld [vmem:[%s3 + $0x2c] sm:$0xf]
    %v1162 = vld [vmem:[%s3 + $0x30] sm:$0xf]
    %v1163 = vld [vmem:[%s3 + $0x34] sm:$0xf]
    %v1164 = vld [vmem:[%s3 + $0x38] sm:$0xf]
    %v1165 = vld [vmem:[%s3 + $0x3c] sm:$0xf]
    %v1166 = vld [vmem:[%s3 + $0x40] sm:$0xf]
    %v1167 = vld [vmem:[%s3 + $0x44] sm:$0xf]
    %v1168 = vld [vmem:[%s3 + $0x48] sm:$0xf]
    %v1169 = vld [vmem:[%s3 + $0x4c] sm:$0xf]
    %v1170 = vld [vmem:[%s3 + $0x50] sm:$0xf]
    %v1171 = vld [vmem:[%s3 + $0x54] sm:$0xf]
    %v1172 = vld [vmem:[%s3 + $0x58] sm:$0xf]
    %v1173 = vld [vmem:[%s3 + $0x5c] sm:$0xf]
    %v1174 = vld [vmem:[%s3 + $0x60] sm:$0xf]
    %v1175 = vld [vmem:[%s3 + $0x64] sm:$0xf]
    %v1176 = vld [vmem:[%s3 + $0x68] sm:$0xf]
    %v1177 = vld [vmem:[%s3 + $0x6c] sm:$0xf]
    %v1178 = vld [vmem:[%s3 + $0x70] sm:$0xf]
    %v1179 = vld [vmem:[%s3 + $0x74] sm:$0xf]
    %v1180 = vld [vmem:[%s3 + $0x78] sm:$0xf]
    %v1181 = vld [vmem:[%s3 + $0x7c] sm:$0xf]
    %v1182 = vld [vmem:[%s3 + $0x80] sm:$0xf]
    %v1183 = vld [vmem:[%s3 + $0x84] sm:$0xf]
    %v1184 = vld [vmem:[%s3 + $0x88] sm:$0xf]
    %v1185 = vld [vmem:[%s3 + $0x8c] sm:$0xf]
    %v1186 = vld [vmem:[%s3 + $0x90] sm:$0xf]
    %v1187 = vld [vmem:[%s3 + $0x94] sm:$0xf]
    %v1188 = vld [vmem:[%s3 + $0x98] sm:$0xf]
    %v1189 = vld [vmem:[%s3 + $0x9c] sm:$0xf]
    %v1190 = vld [vmem:[%s3 + $0xa0] sm:$0xf]
    %v1191 = vld [vmem:[%s3 + $0xa4] sm:$0xf]
    %v1192 = vld [vmem:[%s3 + $0xa8] sm:$0xf]
    %v1193 = vld [vmem:[%s3 + $0xac] sm:$0xf]
    %v1194 = vld [vmem:[%s3 + $0xb0] sm:$0xf]
    %v1195 = vld [vmem:[%s3 + $0xb4] sm:$0xf]
    %v1196 = vld [vmem:[%s3 + $0xb8] sm:$0xf]
    %v1197 = vld [vmem:[%s3 + $0xbc] sm:$0xf]
    %v1198 = vld [vmem:[%s3 + $0xc0] sm:$0xf]
    %v1199 = vld [vmem:[%s3 + $0xc4] sm:$0xf]
    %v1200 = vld [vmem:[%s3 + $0xc8] sm:$0xf]
    %v1201 = vld [vmem:[%s3 + $0xcc] sm:$0xf]
    %v1202 = vld [vmem:[%s3 + $0xd0] sm:$0xf]
    %v1203 = vld [vmem:[%s3 + $0xd4] sm:$0xf]
    %v1204 = vld [vmem:[%s3 + $0xd8] sm:$0xf]
    %v1205 = vld [vmem:[%s3 + $0xdc] sm:$0xf]
    %v1206 = vld [vmem:[%s3 + $0xe0] sm:$0xf]
    %v1207 = vld [vmem:[%s3 + $0xe4] sm:$0xf]
    %v1208 = vld [vmem:[%s3 + $0xe8] sm:$0xf]
    %v1209 = vld [vmem:[%s3 + $0xec] sm:$0xf]
    %v1210 = vld [vmem:[%s3 + $0xf0] sm:$0xf]
    %v1211 = vld [vmem:[%s3 + $0xf4] sm:$0xf]
    %v1212 = vld [vmem:[%s3 + $0xf8] sm:$0xf]
    %v1213 = vld [vmem:[%s3 + $0xfc] sm:$0xf]
    %v1214 = vld [vmem:[%s3 + $0x100] sm:$0xf]
    %v1215 = vld [vmem:[%s3 + $0x104] sm:$0xf]
    %v1216 = vld [vmem:[%s3 + $0x108] sm:$0xf]
    %v1217 = vld [vmem:[%s3 + $0x10c] sm:$0xf]
    %v1218 = vld [vmem:[%s3 + $0x110] sm:$0xf]
    %v1219 = vld [vmem:[%s3 + $0x114] sm:$0xf]
    %v1220 = vld [vmem:[%s3 + $0x118] sm:$0xf]
    %v1221 = vld [vmem:[%s3 + $0x11c] sm:$0xf]
    %v1222 = vld [vmem:[%s3 + $0x120] sm:$0xf]
    %v1223 = vld [vmem:[%s3 + $0x124] sm:$0xf]
    %v1224 = vld [vmem:[%s3 + $0x128] sm:$0xf]
    %v1225 = vld [vmem:[%s3 + $0x12c] sm:$0xf]
    %v1226 = vld [vmem:[%s3 + $0x130] sm:$0xf]
    %v1227 = vld [vmem:[%s3 + $0x134] sm:$0xf]
    %v1228 = vld [vmem:[%s3 + $0x138] sm:$0xf]
    %v1229 = vld [vmem:[%s3 + $0x13c] sm:$0xf]
    %v1230 = vld [vmem:[#allocation8] sm:$0x1]
    %v1232 = vperm.slane %v1230, 0
    %1234 = vst [vmem:[#allocation1] ss:$9 sm:$0xff] %v1086
    %s1235 = scalar_lea.vmem [#allocation1], 1
    %1236 = vst [vmem:[%s1235] ss:$9 sm:$0xff] %v1095
    %s1237 = scalar_lea.vmem [#allocation1], 2
    %1238 = vst [vmem:[%s1237] ss:$9 sm:$0xff] %v1104
    %s1239 = scalar_lea.vmem [#allocation1], 3
    %1240 = vst [vmem:[%s1239] ss:$9 sm:$0xff] %v1113
    %s1241 = scalar_lea.vmem [#allocation1], 4
    %1242 = vst [vmem:[%s1241] ss:$9 sm:$0xff] %v1122
    %s1243 = scalar_lea.vmem [#allocation1], 5
    %1244 = vst [vmem:[%s1243] ss:$9 sm:$0xff] %v1131
    %s1245 = scalar_lea.vmem [#allocation1], 6
    %1246 = vst [vmem:[%s1245] ss:$9 sm:$0xff] %v1140
    %s1247 = scalar_lea.vmem [#allocation1], 7
    %1248 = vst [vmem:[%s1247] ss:$9 sm:$0xff] %v1149
    %v1249 = vld [vmem:[#allocation1] sm:$0xff]
    %v1250 = vld [vmem:[#allocation1 + $0x9] sm:$0xff]
    %v1251 = vld [vmem:[#allocation1 + $0x12] sm:$0xff]
    %v1252 = vld [vmem:[#allocation1 + $0x1b] sm:$0xff]
    %v1253 = vld [vmem:[#allocation1 + $0x24] sm:$0xff]
    %v1339 = vunpack.c.l.b16 %v1150
    %v1340 = vunpack.c.l.b16 %v1151
    %v1341 = vunpack.c.l.b16 %v1152
    %v1342 = vunpack.c.l.b16 %v1153
    %v1343 = vunpack.c.l.b16 %v1154
    %v1344 = vunpack.c.l.b16 %v1155
    %v1345 = vunpack.c.l.b16 %v1156
    %v1346 = vunpack.c.l.b16 %v1157
    %v1347 = vunpack.c.l.b16 %v1158
    %v1348 = vunpack.c.l.b16 %v1159
    %v1349 = vunpack.c.l.b16 %v1160
    %v1350 = vunpack.c.l.b16 %v1161
    %v1351 = vunpack.c.l.b16 %v1162
    %v1352 = vunpack.c.l.b16 %v1163
    %v1353 = vunpack.c.l.b16 %v1164
    %v1354 = vunpack.c.l.b16 %v1165
    %v1355 = vunpack.c.l.b16 %v1166
    %v1356 = vunpack.c.l.b16 %v1167
    %v1357 = vunpack.c.l.b16 %v1168
    %v1358 = vunpack.c.l.b16 %v1169
    %v1359 = vunpack.c.l.b16 %v1170
    %v1360 = vunpack.c.l.b16 %v1171
    %v1361 = vunpack.c.l.b16 %v1172
    %v1362 = vunpack.c.l.b16 %v1173
    %v1363 = vunpack.c.l.b16 %v1174
    %v1364 = vunpack.c.l.b16 %v1175
    %v1365 = vunpack.c.l.b16 %v1176
    %v1366 = vunpack.c.l.b16 %v1177
    %v1367 = vunpack.c.l.b16 %v1178
    %v1368 = vunpack.c.l.b16 %v1179
    %v1369 = vunpack.c.l.b16 %v1180
    %v1370 = vunpack.c.l.b16 %v1181
    %v1371 = vunpack.c.l.b16 %v1182
    %v1372 = vunpack.c.l.b16 %v1183
    %v1373 = vunpack.c.l.b16 %v1184
    %v1374 = vunpack.c.l.b16 %v1185
    %v1375 = vunpack.c.l.b16 %v1186
    %v1376 = vunpack.c.l.b16 %v1187
    %v1377 = vunpack.c.l.b16 %v1188
    %v1378 = vunpack.c.l.b16 %v1189
    %v1379 = vunpack.c.l.b16 %v1190
    %v1380 = vunpack.c.l.b16 %v1191
    %v1381 = vunpack.c.l.b16 %v1192
    %v1382 = vunpack.c.l.b16 %v1193
    %v1383 = vunpack.c.l.b16 %v1194
    %v1384 = vunpack.c.l.b16 %v1195
    %v1385 = vunpack.c.l.b16 %v1196
    %v1386 = vunpack.c.l.b16 %v1197
    %v1387 = vunpack.c.l.b16 %v1198
    %v1388 = vunpack.c.l.b16 %v1199
    %v1389 = vunpack.c.l.b16 %v1200
    %v1390 = vunpack.c.l.b16 %v1201
    %v1391 = vunpack.c.l.b16 %v1202
    %v1392 = vunpack.c.l.b16 %v1203
    %v1393 = vunpack.c.l.b16 %v1204
    %v1394 = vunpack.c.l.b16 %v1205
    %v1395 = vunpack.c.l.b16 %v1206
    %v1396 = vunpack.c.l.b16 %v1207
    %v1397 = vunpack.c.l.b16 %v1208
    %v1398 = vunpack.c.l.b16 %v1209
    %v1399 = vunpack.c.l.b16 %v1210
    %v1400 = vunpack.c.l.b16 %v1211
    %v1401 = vunpack.c.l.b16 %v1212
    %v1402 = vunpack.c.l.b16 %v1213
    %v1403 = vunpack.c.l.b16 %v1214
    %v1404 = vunpack.c.l.b16 %v1215
    %v1405 = vunpack.c.l.b16 %v1216
    %v1406 = vunpack.c.l.b16 %v1217
    %v1407 = vunpack.c.l.b16 %v1218
    %v1408 = vunpack.c.l.b16 %v1219
    %v1409 = vunpack.c.l.b16 %v1220
    %v1410 = vunpack.c.l.b16 %v1221
    %v1411 = vunpack.c.l.b16 %v1222
    %v1412 = vunpack.c.l.b16 %v1223
    %v1413 = vunpack.c.l.b16 %v1224
    %v1414 = vunpack.c.l.b16 %v1225
    %v1415 = vunpack.c.l.b16 %v1226
    %v1416 = vunpack.c.l.b16 %v1227
    %v1417 = vunpack.c.l.b16 %v1228
    %v1418 = vunpack.c.l.b16 %v1229
    %v1419 = vpack.c.b16 %v1340, %v1339
    %v1420 = vpack.c.b16 %v1342, %v1341
    %v1421 = vpack.c.b16 %v1344, %v1343
    %v1422 = vpack.c.b16 %v1346, %v1345
    %v1423 = vpack.c.b16 %v1348, %v1347
    %v1424 = vpack.c.b16 %v1350, %v1349
    %v1425 = vpack.c.b16 %v1352, %v1351
    %v1426 = vpack.c.b16 %v1354, %v1353
    %v1427 = vpack.c.b16 %v1356, %v1355
    %v1428 = vpack.c.b16 %v1358, %v1357
    %v1429 = vpack.c.b16 %v1360, %v1359
    %v1430 = vpack.c.b16 %v1362, %v1361
    %v1431 = vpack.c.b16 %v1364, %v1363
    %v1432 = vpack.c.b16 %v1366, %v1365
    %v1433 = vpack.c.b16 %v1368, %v1367
    %v1434 = vpack.c.b16 %v1370, %v1369
    %v1435 = vpack.c.b16 %v1372, %v1371
    %v1436 = vpack.c.b16 %v1374, %v1373
    %v1437 = vpack.c.b16 %v1376, %v1375
    %v1438 = vpack.c.b16 %v1378, %v1377
    %v1439 = vpack.c.b16 %v1380, %v1379
    %v1440 = vpack.c.b16 %v1382, %v1381
    %v1441 = vpack.c.b16 %v1384, %v1383
    %v1442 = vpack.c.b16 %v1386, %v1385
    %v1443 = vpack.c.b16 %v1388, %v1387
    %v1444 = vpack.c.b16 %v1390, %v1389
    %v1445 = vpack.c.b16 %v1392, %v1391
    %v1446 = vpack.c.b16 %v1394, %v1393
    %v1447 = vpack.c.b16 %v1396, %v1395
    %v1448 = vpack.c.b16 %v1398, %v1397
    %v1449 = vpack.c.b16 %v1400, %v1399
    %v1450 = vpack.c.b16 %v1402, %v1401
    %v1451 = vpack.c.b16 %v1404, %v1403
    %v1452 = vpack.c.b16 %v1406, %v1405
    %v1453 = vpack.c.b16 %v1408, %v1407
    %v1454 = vpack.c.b16 %v1410, %v1409
    %v1455 = vpack.c.b16 %v1412, %v1411
    %v1456 = vpack.c.b16 %v1414, %v1413
    %v1457 = vpack.c.b16 %v1416, %v1415
    %v1458 = vpack.c.b16 %v1418, %v1417
    %1499 = vmatpush.bf16.msra.mxu0 %v1426
    %1500 = vmatpush.bf16.msra.mxu0 %v1425
    %1501 = vmatpush.bf16.msra.mxu0 %v1424
    %1502 = vmatpush.bf16.msra.mxu0 %v1423
    %1503 = vmatpush.bf16.msra.mxu0 %v1422
    %1504 = vmatpush.bf16.msra.mxu0 %v1421
    %1505 = vmatpush.bf16.msra.mxu0 %v1420
    %1506 = vmatpush.bf16.msra.mxu0 %v1419
    %1507 = vmatmul.bf16.gmra.mxu0 %v1249
    %v1508 = vpop.f32.mrf.mxu0
    %v1509 = vadd.f32 %v1232, %v1508
    %v1510 = vpop.f32.mrf.mxu0
    %v1511 = vadd.f32 %v1232, %v1510
    %1512 = vdwg.mxu0
    %1513 = vmatpush.bf16.msra.mxu0 %v1434
    %1514 = vmatpush.bf16.msra.mxu0 %v1433
    %1515 = vmatpush.bf16.msra.mxu0 %v1432
    %1516 = vmatpush.bf16.msra.mxu0 %v1431
    %1517 = vmatpush.bf16.msra.mxu0 %v1430
    %1518 = vmatpush.bf16.msra.mxu0 %v1429
    %1519 = vmatpush.bf16.msra.mxu0 %v1428
    %1520 = vmatpush.bf16.msra.mxu0 %v1427
    %1521 = vmatmul.bf16.gmra.mxu0 %v1250
    %v1522 = vpop.f32.mrf.mxu0
    %v1523 = vadd.f32 %v1509, %v1522
    %v1524 = vpop.f32.mrf.mxu0
    %v1525 = vadd.f32 %v1511, %v1524
    %1526 = vdwg.mxu0
    %1527 = vmatpush.bf16.msra.mxu0 %v1442
    %1528 = vmatpush.bf16.msra.mxu0 %v1441
    %1529 = vmatpush.bf16.msra.mxu0 %v1440
    %1530 = vmatpush.bf16.msra.mxu0 %v1439
    %1531 = vmatpush.bf16.msra.mxu0 %v1438
    %1532 = vmatpush.bf16.msra.mxu0 %v1437
    %1533 = vmatpush.bf16.msra.mxu0 %v1436
    %1534 = vmatpush.bf16.msra.mxu0 %v1435
    %1535 = vmatmul.bf16.gmra.mxu0 %v1251
    %v1536 = vpop.f32.mrf.mxu0
    %v1537 = vadd.f32 %v1523, %v1536
    %v1538 = vpop.f32.mrf.mxu0
    %v1539 = vadd.f32 %v1525, %v1538
    %1540 = vdwg.mxu0
    %1541 = vmatpush.bf16.msra.mxu0 %v1450
    %1542 = vmatpush.bf16.msra.mxu0 %v1449
    %1543 = vmatpush.bf16.msra.mxu0 %v1448
    %1544 = vmatpush.bf16.msra.mxu0 %v1447
    %1545 = vmatpush.bf16.msra.mxu0 %v1446
    %1546 = vmatpush.bf16.msra.mxu0 %v1445
    %1547 = vmatpush.bf16.msra.mxu0 %v1444
    %1548 = vmatpush.bf16.msra.mxu0 %v1443
    %1549 = vmatmul.bf16.gmra.mxu0 %v1252
    %v1550 = vpop.f32.mrf.mxu0
    %v1551 = vadd.f32 %v1537, %v1550
    %v1552 = vpop.f32.mrf.mxu0
    %v1553 = vadd.f32 %v1539, %v1552
    %1554 = vdwg.mxu0
    %1555 = vmatpush.bf16.msra.mxu0 %v1458
    %1556 = vmatpush.bf16.msra.mxu0 %v1457
    %1557 = vmatpush.bf16.msra.mxu0 %v1456
    %1558 = vmatpush.bf16.msra.mxu0 %v1455
    %1559 = vmatpush.bf16.msra.mxu0 %v1454
    %1560 = vmatpush.bf16.msra.mxu0 %v1453
    %1561 = vmatpush.bf16.msra.mxu0 %v1452
    %1562 = vmatpush.bf16.msra.mxu0 %v1451
    %1563 = vmatmul.bf16.gmra.mxu0 %v1253
    %v1564 = vpop.f32.mrf.mxu0
    %v1565 = vadd.f32 %v1551, %v1564
    %v1566 = vpop.f32.mrf.mxu0
    %v1567 = vadd.f32 %v1553, %v1566
    %1568 = vdwg.mxu0
    %v1569 = vld [vmem:[#allocation10] sm:$0x1]
    %v1570 = vld [vmem:[#allocation11] sm:$0x1]
    %v1571 = vadd.f32 %v1565, %v1567
    %v1572 = vrot.slane %v1571, 4
    %v1573 = vadd.f32 %v1571, %v1572
    %v1574 = vrot.slane %v1573, 2
    %v1575 = vadd.f32 %v1573, %v1574
    %v1576 = vrot.slane %v1575, 1
    %v1577 = vadd.f32 %v1575, %v1576
    %v1578 = vrcp.pop 16.0
    %v1579 = vmul.f32 16.0, %v1578
    %v1580 = vsub.f32 1.0, %v1579
    %v1581 = vmul.f32 %v1578, %v1580
    %v1582 = vadd.f32 %v1578, %v1581
    %vm1583 = vweird.f32 %v1578
    %v1584 = vsel %vm1583, %v1578, %v1582
    %v1585 = vmul.f32 %v1577, %v1584
    %1586 = vrot.lane.b32.xlu0 %v1585, 16
    %v1587 = vpop.permute.xlu0 %1586
    %v1588 = vadd.f32 %v1585, %v1587
    %1589 = vrot.lane.b32.xlu0 %v1588, 32
    %v1590 = vpop.permute.xlu0 %1589
    %v1591 = vadd.f32 %v1588, %v1590
    %1592 = vrot.lane.b32.xlu0 %v1591, 64
    %v1593 = vpop.permute.xlu0 %1592
    %v1594 = vadd.f32 %v1591, %v1593
    %v1595 = vmul.f32 %v1594, 0.125
    %v1596 = vperm.slane %v1595, 0
    %v1597 = vsub.f32 %v1565, %v1596
    %v1598 = vsub.f32 %v1567, %v1596
    %v1599 = vmul.f32 %v1597, %v1597
    %v1600 = vmul.f32 %v1598, %v1598
    %v1601 = vadd.f32 %v1599, %v1600
    %v1602 = vrot.slane %v1601, 4
    %v1603 = vadd.f32 %v1601, %v1602
    %v1604 = vrot.slane %v1603, 2
    %v1605 = vadd.f32 %v1603, %v1604
    %v1606 = vrot.slane %v1605, 1
    %v1607 = vadd.f32 %v1605, %v1606
    %v1608 = vmul.f32 %v1607, %v1584
    %1609 = vrot.lane.b32.xlu0 %v1608, 16
    %v1610 = vpop.permute.xlu0 %1609
    %v1611 = vadd.f32 %v1608, %v1610
    %1612 = vrot.lane.b32.xlu0 %v1611, 32
    %v1613 = vpop.permute.xlu0 %1612
    %v1614 = vadd.f32 %v1611, %v1613
    %1615 = vrot.lane.b32.xlu0 %v1614, 64
    %v1616 = vpop.permute.xlu0 %1615
    %v1617 = vadd.f32 %v1614, %v1616
    %v1618 = vmul.f32 %v1617, 0.125
    %v1619 = vadd.f32 %v1618, 1e-05
    %v1620 = vrsqrt.pop %v1619
    %v1621 = vmul.f32 %v1620, %v1619
    %v1622 = vmul.f32 %v1621, %v1620
    %v1623 = vmul.f32 0.5, %v1622
    %v1624 = vsub.f32 1.5, %v1623
    %v1625 = vmul.f32 %v1620, %v1624
    %vm1626 = vweird.f32 %v1619
    %vm1627 = vweird.f32 %v1620
    %vm1628 = vmor %vm1626, %vm1627
    %v1629 = vsel %vm1628, %v1620, %v1625
    %v1630 = vperm.slane %v1629, 0
    %v1631 = vmul.f32 %v1597, %v1630
    %v1632 = vmul.f32 %v1598, %v1630
    %v1634 = vperm.slane %v1569, 0
    %v1636 = vmul.f32 %v1631, %v1634
    %v1637 = vmul.f32 %v1632, %v1634
    %v1639 = vperm.slane %v1570, 0
    %v1641 = vadd.f32 %v1636, %v1639
    %v1642 = vadd.f32 %v1637, %v1639
    %vm1643 = vcmp.ge.f32.partialorder %v1641, 0.0
    %vm1644 = vcmp.ge.f32.partialorder %v1642, 0.0
    %v1645 = vmul.f32 %v1641, 0.2
    %v1646 = vmul.f32 %v1642, 0.2
    %v1647 = vsel %vm1643, %v1641, %v1645
    %v1648 = vsel %vm1644, %v1642, %v1646
    %v1649 = vpack.c.bf16 %v1647, %v1647
    %v1650 = vpack.c.bf16 %v1648, %v1648
    %v1653 = vrot.slane %v1649, 3
    %v1654 = vrot.slane %v1650, 3
    %v1657 = vsel %vm571, %v1649, %v1653
    %v1658 = vsel %vm922, %v1649, %v1653
    %v1660 = vrot.slane %v1658, 1
    %v1661 = vsel %vm926, %v1649, %v1653
    %v1663 = vrot.slane %v1661, 2
    %v1664 = vsel %vm930, %v1649, %v1653
    %v1666 = vrot.slane %v1664, 3
    %v1669 = vsel %vm571, %v1650, %v1654
    %v1670 = vsel %vm922, %v1650, %v1654
    %v1672 = vrot.slane %v1670, 1
    %v1673 = vsel %vm926, %v1650, %v1654
    %v1675 = vrot.slane %v1673, 2
    %v1676 = vsel %vm930, %v1650, %v1654
    %v1678 = vrot.slane %v1676, 3
    %1687 = vst [vmem:[#allocation4] sm:$0x1] 0
    %1688 = vst [vmem:[#allocation4 + $0x1] sm:$0x1] 0
    %s1689 = scalar_lea.vmem [#allocation4], 2
    %1690 = vst [vmem:[%s1689] sm:$0x1] %v1657
    %1691 = vst [vmem:[%s1689 + $0x1] sm:$0x1] %v1660
    %1692 = vst [vmem:[%s1689 + $0x2] sm:$0x1] %v1663
    %1693 = vst [vmem:[%s1689 + $0x3] sm:$0x1] %v1666
    %1694 = vst [vmem:[%s1689 + $0x4] sm:$0x1] %v1669
    %1695 = vst [vmem:[%s1689 + $0x5] sm:$0x1] %v1672
    %1696 = vst [vmem:[%s1689 + $0x6] sm:$0x1] %v1675
    %1697 = vst [vmem:[%s1689 + $0x7] sm:$0x1] %v1678
    %s1698 = scalar_lea.vmem [#allocation4], 10
    %1699 = vst [vmem:[%s1698] sm:$0x1] 0
    %1700 = vst [vmem:[%s1698 + $0x1] sm:$0x1] 0
    %v1701 = vld [vmem:[#allocation4] sm:$0x1]
    %v1702 = vld [vmem:[#allocation4 + $0x1] sm:$0x1]
    %v1703 = vld [vmem:[#allocation4 + $0x2] sm:$0x1]
    %v1704 = vld [vmem:[#allocation4 + $0x3] sm:$0x1]
    %v1705 = vld [vmem:[#allocation4 + $0x4] sm:$0x1]
    %v1706 = vld [vmem:[#allocation4 + $0x5] sm:$0x1]
    %v1707 = vld [vmem:[#allocation4 + $0x6] sm:$0x1]
    %v1708 = vld [vmem:[#allocation4 + $0x7] sm:$0x1]
    %v1709 = vld [vmem:[#allocation4 + $0x8] sm:$0x1]
    %v1710 = vld [vmem:[#allocation4 + $0x9] sm:$0x1]
    %v1711 = vld [vmem:[#allocation4 + $0xa] sm:$0x1]
    %v1722 = vrot.slane %v1702, 7
    %v1723 = vrot.slane %v1703, 6
    %v1724 = vrot.slane %v1704, 5
    %v1725 = vrot.slane %v1705, 4
    %v1726 = vrot.slane %v1704, 7
    %v1727 = vrot.slane %v1705, 6
    %v1728 = vrot.slane %v1706, 5
    %v1729 = vrot.slane %v1707, 4
    %v1730 = vrot.slane %v1706, 7
    %v1731 = vrot.slane %v1707, 6
    %v1732 = vrot.slane %v1708, 5
    %v1733 = vrot.slane %v1709, 4
    %v1734 = vrot.slane %v1708, 7
    %v1735 = vrot.slane %v1709, 6
    %v1736 = vrot.slane %v1710, 5
    %v1737 = vrot.slane %v1711, 4
    %v1740 = vsel %vm571, %v1701, %v1722
    %v1742 = vsel %vm574, %v1740, %v1723
    %v1745 = vsel %vm930, %v1724, %v1725
    %v1746 = vsel %vm1085, %v1742, %v1745
    %v1749 = vsel %vm571, %v1703, %v1726
    %v1751 = vsel %vm574, %v1749, %v1727
    %v1754 = vsel %vm930, %v1728, %v1729
    %v1755 = vsel %vm1085, %v1751, %v1754
    %v1758 = vsel %vm571, %v1705, %v1730
    %v1760 = vsel %vm574, %v1758, %v1731
    %v1763 = vsel %vm930, %v1732, %v1733
    %v1764 = vsel %vm1085, %v1760, %v1763
    %v1767 = vsel %vm571, %v1707, %v1734
    %v1769 = vsel %vm574, %v1767, %v1735
    %v1772 = vsel %vm930, %v1736, %v1737
    %v1773 = vsel %vm1085, %v1769, %v1772
    %v1774 = vld [vmem:[%s7] sm:$0xf]
    %v1775 = vld [vmem:[%s7 + $0x4] sm:$0xf]
    %v1776 = vld [vmem:[%s7 + $0x8] sm:$0xf]
    %v1777 = vld [vmem:[%s7 + $0xc] sm:$0xf]
    %v1778 = vld [vmem:[%s7 + $0x10] sm:$0xf]
    %v1779 = vld [vmem:[%s7 + $0x14] sm:$0xf]
    %v1780 = vld [vmem:[%s7 + $0x18] sm:$0xf]
    %v1781 = vld [vmem:[%s7 + $0x1c] sm:$0xf]
    %v1782 = vld [vmem:[%s7 + $0x20] sm:$0xf]
    %v1783 = vld [vmem:[%s7 + $0x24] sm:$0xf]
    %v1784 = vld [vmem:[%s7 + $0x28] sm:$0xf]
    %v1785 = vld [vmem:[%s7 + $0x2c] sm:$0xf]
    %v1786 = vld [vmem:[%s7 + $0x30] sm:$0xf]
    %v1787 = vld [vmem:[%s7 + $0x34] sm:$0xf]
    %v1788 = vld [vmem:[%s7 + $0x38] sm:$0xf]
    %v1789 = vld [vmem:[%s7 + $0x3c] sm:$0xf]
    %v1790 = vld [vmem:[%s7 + $0x40] sm:$0xf]
    %v1791 = vld [vmem:[%s7 + $0x44] sm:$0xf]
    %v1792 = vld [vmem:[%s7 + $0x48] sm:$0xf]
    %v1793 = vld [vmem:[%s7 + $0x4c] sm:$0xf]
    %v1794 = vld [vmem:[%s7 + $0x50] sm:$0xf]
    %v1795 = vld [vmem:[%s7 + $0x54] sm:$0xf]
    %v1796 = vld [vmem:[%s7 + $0x58] sm:$0xf]
    %v1797 = vld [vmem:[%s7 + $0x5c] sm:$0xf]
    %v1798 = vld [vmem:[%s7 + $0x60] sm:$0xf]
    %v1799 = vld [vmem:[%s7 + $0x64] sm:$0xf]
    %v1800 = vld [vmem:[%s7 + $0x68] sm:$0xf]
    %v1801 = vld [vmem:[%s7 + $0x6c] sm:$0xf]
    %v1802 = vld [vmem:[%s7 + $0x70] sm:$0xf]
    %v1803 = vld [vmem:[%s7 + $0x74] sm:$0xf]
    %v1804 = vld [vmem:[%s7 + $0x78] sm:$0xf]
    %v1805 = vld [vmem:[%s7 + $0x7c] sm:$0xf]
    %v1806 = vld [vmem:[%s7 + $0x80] sm:$0xf]
    %v1807 = vld [vmem:[%s7 + $0x84] sm:$0xf]
    %v1808 = vld [vmem:[%s7 + $0x88] sm:$0xf]
    %v1809 = vld [vmem:[%s7 + $0x8c] sm:$0xf]
    %v1810 = vld [vmem:[%s7 + $0x90] sm:$0xf]
    %v1811 = vld [vmem:[%s7 + $0x94] sm:$0xf]
    %v1812 = vld [vmem:[%s7 + $0x98] sm:$0xf]
    %v1813 = vld [vmem:[%s7 + $0x9c] sm:$0xf]
    %v1814 = vld [vmem:[%s7 + $0xa0] sm:$0xf]
    %v1815 = vld [vmem:[%s7 + $0xa4] sm:$0xf]
    %v1816 = vld [vmem:[%s7 + $0xa8] sm:$0xf]
    %v1817 = vld [vmem:[%s7 + $0xac] sm:$0xf]
    %v1818 = vld [vmem:[%s7 + $0xb0] sm:$0xf]
    %v1819 = vld [vmem:[%s7 + $0xb4] sm:$0xf]
    %v1820 = vld [vmem:[%s7 + $0xb8] sm:$0xf]
    %v1821 = vld [vmem:[%s7 + $0xbc] sm:$0xf]
    %v1822 = vld [vmem:[%s7 + $0xc0] sm:$0xf]
    %v1823 = vld [vmem:[%s7 + $0xc4] sm:$0xf]
    %v1824 = vld [vmem:[%s7 + $0xc8] sm:$0xf]
    %v1825 = vld [vmem:[%s7 + $0xcc] sm:$0xf]
    %v1826 = vld [vmem:[%s7 + $0xd0] sm:$0xf]
    %v1827 = vld [vmem:[%s7 + $0xd4] sm:$0xf]
    %v1828 = vld [vmem:[%s7 + $0xd8] sm:$0xf]
    %v1829 = vld [vmem:[%s7 + $0xdc] sm:$0xf]
    %v1830 = vld [vmem:[%s7 + $0xe0] sm:$0xf]
    %v1831 = vld [vmem:[%s7 + $0xe4] sm:$0xf]
    %v1832 = vld [vmem:[%s7 + $0xe8] sm:$0xf]
    %v1833 = vld [vmem:[%s7 + $0xec] sm:$0xf]
    %v1834 = vld [vmem:[%s7 + $0xf0] sm:$0xf]
    %v1835 = vld [vmem:[%s7 + $0xf4] sm:$0xf]
    %v1836 = vld [vmem:[%s7 + $0xf8] sm:$0xf]
    %v1837 = vld [vmem:[%s7 + $0xfc] sm:$0xf]
    %v1838 = vld [vmem:[%s7 + $0x100] sm:$0xf]
    %v1839 = vld [vmem:[%s7 + $0x104] sm:$0xf]
    %v1840 = vld [vmem:[%s7 + $0x108] sm:$0xf]
    %v1841 = vld [vmem:[%s7 + $0x10c] sm:$0xf]
    %v1842 = vld [vmem:[%s7 + $0x110] sm:$0xf]
    %v1843 = vld [vmem:[%s7 + $0x114] sm:$0xf]
    %v1844 = vld [vmem:[%s7 + $0x118] sm:$0xf]
    %v1845 = vld [vmem:[%s7 + $0x11c] sm:$0xf]
    %v1846 = vld [vmem:[%s7 + $0x120] sm:$0xf]
    %v1847 = vld [vmem:[%s7 + $0x124] sm:$0xf]
    %v1848 = vld [vmem:[%s7 + $0x128] sm:$0xf]
    %v1849 = vld [vmem:[%s7 + $0x12c] sm:$0xf]
    %v1850 = vld [vmem:[%s7 + $0x130] sm:$0xf]
    %v1851 = vld [vmem:[%s7 + $0x134] sm:$0xf]
    %v1852 = vld [vmem:[%s7 + $0x138] sm:$0xf]
    %v1853 = vld [vmem:[%s7 + $0x13c] sm:$0xf]
    %v1854 = vld [vmem:[#allocation13] sm:$0x1]
    %v1856 = vperm.slane %v1854, 0
    %1858 = vst [vmem:[#allocation1] ss:$9 sm:$0xff] %v1746
    %s1859 = scalar_lea.vmem [#allocation1], 1
    %1860 = vst [vmem:[%s1859] ss:$9 sm:$0xff] %v1755
    %s1861 = scalar_lea.vmem [#allocation1], 2
    %1862 = vst [vmem:[%s1861] ss:$9 sm:$0xff] %v1764
    %s1863 = scalar_lea.vmem [#allocation1], 3
    %1864 = vst [vmem:[%s1863] ss:$9 sm:$0xff] %v1773
    %v1865 = vld [vmem:[#allocation1] sm:$0xff]
    %v1866 = vld [vmem:[#allocation1 + $0x9] sm:$0xff]
    %v1867 = vld [vmem:[#allocation1 + $0x12] sm:$0xff]
    %v1868 = vld [vmem:[#allocation1 + $0x1b] sm:$0xff]
    %v1869 = vld [vmem:[#allocation1 + $0x24] sm:$0xff]
    %v1955 = vunpack.c.l.b16 %v1774
    %v1956 = vunpack.c.l.b16 %v1775
    %v1957 = vunpack.c.l.b16 %v1776
    %v1958 = vunpack.c.l.b16 %v1777
    %v1959 = vunpack.c.l.b16 %v1778
    %v1960 = vunpack.c.l.b16 %v1779
    %v1961 = vunpack.c.l.b16 %v1780
    %v1962 = vunpack.c.l.b16 %v1781
    %v1963 = vunpack.c.l.b16 %v1782
    %v1964 = vunpack.c.l.b16 %v1783
    %v1965 = vunpack.c.l.b16 %v1784
    %v1966 = vunpack.c.l.b16 %v1785
    %v1967 = vunpack.c.l.b16 %v1786
    %v1968 = vunpack.c.l.b16 %v1787
    %v1969 = vunpack.c.l.b16 %v1788
    %v1970 = vunpack.c.l.b16 %v1789
    %v1971 = vunpack.c.l.b16 %v1790
    %v1972 = vunpack.c.l.b16 %v1791
    %v1973 = vunpack.c.l.b16 %v1792
    %v1974 = vunpack.c.l.b16 %v1793
    %v1975 = vunpack.c.l.b16 %v1794
    %v1976 = vunpack.c.l.b16 %v1795
    %v1977 = vunpack.c.l.b16 %v1796
    %v1978 = vunpack.c.l.b16 %v1797
    %v1979 = vunpack.c.l.b16 %v1798
    %v1980 = vunpack.c.l.b16 %v1799
    %v1981 = vunpack.c.l.b16 %v1800
    %v1982 = vunpack.c.l.b16 %v1801
    %v1983 = vunpack.c.l.b16 %v1802
    %v1984 = vunpack.c.l.b16 %v1803
    %v1985 = vunpack.c.l.b16 %v1804
    %v1986 = vunpack.c.l.b16 %v1805
    %v1987 = vunpack.c.l.b16 %v1806
    %v1988 = vunpack.c.l.b16 %v1807
    %v1989 = vunpack.c.l.b16 %v1808
    %v1990 = vunpack.c.l.b16 %v1809
    %v1991 = vunpack.c.l.b16 %v1810
    %v1992 = vunpack.c.l.b16 %v1811
    %v1993 = vunpack.c.l.b16 %v1812
    %v1994 = vunpack.c.l.b16 %v1813
    %v1995 = vunpack.c.l.b16 %v1814
    %v1996 = vunpack.c.l.b16 %v1815
    %v1997 = vunpack.c.l.b16 %v1816
    %v1998 = vunpack.c.l.b16 %v1817
    %v1999 = vunpack.c.l.b16 %v1818
    %v2000 = vunpack.c.l.b16 %v1819
    %v2001 = vunpack.c.l.b16 %v1820
    %v2002 = vunpack.c.l.b16 %v1821
    %v2003 = vunpack.c.l.b16 %v1822
    %v2004 = vunpack.c.l.b16 %v1823
    %v2005 = vunpack.c.l.b16 %v1824
    %v2006 = vunpack.c.l.b16 %v1825
    %v2007 = vunpack.c.l.b16 %v1826
    %v2008 = vunpack.c.l.b16 %v1827
    %v2009 = vunpack.c.l.b16 %v1828
    %v2010 = vunpack.c.l.b16 %v1829
    %v2011 = vunpack.c.l.b16 %v1830
    %v2012 = vunpack.c.l.b16 %v1831
    %v2013 = vunpack.c.l.b16 %v1832
    %v2014 = vunpack.c.l.b16 %v1833
    %v2015 = vunpack.c.l.b16 %v1834
    %v2016 = vunpack.c.l.b16 %v1835
    %v2017 = vunpack.c.l.b16 %v1836
    %v2018 = vunpack.c.l.b16 %v1837
    %v2019 = vunpack.c.l.b16 %v1838
    %v2020 = vunpack.c.l.b16 %v1839
    %v2021 = vunpack.c.l.b16 %v1840
    %v2022 = vunpack.c.l.b16 %v1841
    %v2023 = vunpack.c.l.b16 %v1842
    %v2024 = vunpack.c.l.b16 %v1843
    %v2025 = vunpack.c.l.b16 %v1844
    %v2026 = vunpack.c.l.b16 %v1845
    %v2027 = vunpack.c.l.b16 %v1846
    %v2028 = vunpack.c.l.b16 %v1847
    %v2029 = vunpack.c.l.b16 %v1848
    %v2030 = vunpack.c.l.b16 %v1849
    %v2031 = vunpack.c.l.b16 %v1850
    %v2032 = vunpack.c.l.b16 %v1851
    %v2033 = vunpack.c.l.b16 %v1852
    %v2034 = vunpack.c.l.b16 %v1853
    %v2035 = vpack.c.b16 %v1956, %v1955
    %v2036 = vpack.c.b16 %v1958, %v1957
    %v2037 = vpack.c.b16 %v1960, %v1959
    %v2038 = vpack.c.b16 %v1962, %v1961
    %v2039 = vpack.c.b16 %v1964, %v1963
    %v2040 = vpack.c.b16 %v1966, %v1965
    %v2041 = vpack.c.b16 %v1968, %v1967
    %v2042 = vpack.c.b16 %v1970, %v1969
    %v2043 = vpack.c.b16 %v1972, %v1971
    %v2044 = vpack.c.b16 %v1974, %v1973
    %v2045 = vpack.c.b16 %v1976, %v1975
    %v2046 = vpack.c.b16 %v1978, %v1977
    %v2047 = vpack.c.b16 %v1980, %v1979
    %v2048 = vpack.c.b16 %v1982, %v1981
    %v2049 = vpack.c.b16 %v1984, %v1983
    %v2050 = vpack.c.b16 %v1986, %v1985
    %v2051 = vpack.c.b16 %v1988, %v1987
    %v2052 = vpack.c.b16 %v1990, %v1989
    %v2053 = vpack.c.b16 %v1992, %v1991
    %v2054 = vpack.c.b16 %v1994, %v1993
    %v2055 = vpack.c.b16 %v1996, %v1995
    %v2056 = vpack.c.b16 %v1998, %v1997
    %v2057 = vpack.c.b16 %v2000, %v1999
    %v2058 = vpack.c.b16 %v2002, %v2001
    %v2059 = vpack.c.b16 %v2004, %v2003
    %v2060 = vpack.c.b16 %v2006, %v2005
    %v2061 = vpack.c.b16 %v2008, %v2007
    %v2062 = vpack.c.b16 %v2010, %v2009
    %v2063 = vpack.c.b16 %v2012, %v2011
    %v2064 = vpack.c.b16 %v2014, %v2013
    %v2065 = vpack.c.b16 %v2016, %v2015
    %v2066 = vpack.c.b16 %v2018, %v2017
    %v2067 = vpack.c.b16 %v2020, %v2019
    %v2068 = vpack.c.b16 %v2022, %v2021
    %v2069 = vpack.c.b16 %v2024, %v2023
    %v2070 = vpack.c.b16 %v2026, %v2025
    %v2071 = vpack.c.b16 %v2028, %v2027
    %v2072 = vpack.c.b16 %v2030, %v2029
    %v2073 = vpack.c.b16 %v2032, %v2031
    %v2074 = vpack.c.b16 %v2034, %v2033
    %2115 = vmatpush.bf16.msra.mxu0 %v2042
    %2116 = vmatpush.bf16.msra.mxu0 %v2041
    %2117 = vmatpush.bf16.msra.mxu0 %v2040
    %2118 = vmatpush.bf16.msra.mxu0 %v2039
    %2119 = vmatpush.bf16.msra.mxu0 %v2038
    %2120 = vmatpush.bf16.msra.mxu0 %v2037
    %2121 = vmatpush.bf16.msra.mxu0 %v2036
    %2122 = vmatpush.bf16.msra.mxu0 %v2035
    %2123 = vmatmul.bf16.gmra.mxu0 %v1865
    %v2124 = vpop.f32.mrf.mxu0
    %v2125 = vadd.f32 %v1856, %v2124
    %v2126 = vpop.f32.mrf.mxu0
    %2127 = vdwg.mxu0
    %2128 = vmatpush.bf16.msra.mxu0 %v2050
    %2129 = vmatpush.bf16.msra.mxu0 %v2049
    %2130 = vmatpush.bf16.msra.mxu0 %v2048
    %2131 = vmatpush.bf16.msra.mxu0 %v2047
    %2132 = vmatpush.bf16.msra.mxu0 %v2046
    %2133 = vmatpush.bf16.msra.mxu0 %v2045
    %2134 = vmatpush.bf16.msra.mxu0 %v2044
    %2135 = vmatpush.bf16.msra.mxu0 %v2043
    %2136 = vmatmul.bf16.gmra.mxu0 %v1866
    %v2137 = vpop.f32.mrf.mxu0
    %v2138 = vadd.f32 %v2125, %v2137
    %v2139 = vpop.f32.mrf.mxu0
    %2140 = vdwg.mxu0
    %2141 = vmatpush.bf16.msra.mxu0 %v2058
    %2142 = vmatpush.bf16.msra.mxu0 %v2057
    %2143 = vmatpush.bf16.msra.mxu0 %v2056
    %2144 = vmatpush.bf16.msra.mxu0 %v2055
    %2145 = vmatpush.bf16.msra.mxu0 %v2054
    %2146 = vmatpush.bf16.msra.mxu0 %v2053
    %2147 = vmatpush.bf16.msra.mxu0 %v2052
    %2148 = vmatpush.bf16.msra.mxu0 %v2051
    %2149 = vmatmul.bf16.gmra.mxu0 %v1867
    %v2150 = vpop.f32.mrf.mxu0
    %v2151 = vadd.f32 %v2138, %v2150
    %v2152 = vpop.f32.mrf.mxu0
    %2153 = vdwg.mxu0
    %2154 = vmatpush.bf16.msra.mxu0 %v2066
    %2155 = vmatpush.bf16.msra.mxu0 %v2065
    %2156 = vmatpush.bf16.msra.mxu0 %v2064
    %2157 = vmatpush.bf16.msra.mxu0 %v2063
    %2158 = vmatpush.bf16.msra.mxu0 %v2062
    %2159 = vmatpush.bf16.msra.mxu0 %v2061
    %2160 = vmatpush.bf16.msra.mxu0 %v2060
    %2161 = vmatpush.bf16.msra.mxu0 %v2059
    %2162 = vmatmul.bf16.gmra.mxu0 %v1868
    %v2163 = vpop.f32.mrf.mxu0
    %v2164 = vadd.f32 %v2151, %v2163
    %v2165 = vpop.f32.mrf.mxu0
    %2166 = vdwg.mxu0
    %2167 = vmatpush.bf16.msra.mxu0 %v2074
    %2168 = vmatpush.bf16.msra.mxu0 %v2073
    %2169 = vmatpush.bf16.msra.mxu0 %v2072
    %2170 = vmatpush.bf16.msra.mxu0 %v2071
    %2171 = vmatpush.bf16.msra.mxu0 %v2070
    %2172 = vmatpush.bf16.msra.mxu0 %v2069
    %2173 = vmatpush.bf16.msra.mxu0 %v2068
    %2174 = vmatpush.bf16.msra.mxu0 %v2067
    %2175 = vmatmul.bf16.gmra.mxu0 %v1869
    %v2176 = vpop.f32.mrf.mxu0
    %v2177 = vadd.f32 %v2164, %v2176
    %v2178 = vpop.f32.mrf.mxu0
    %2179 = vdwg.mxu0
    %v2180 = vld [vmem:[#allocation14] sm:$0x1]
    %v2181 = vld [vmem:[#allocation16] sm:$0x1]
    %v2182 = vrot.slane %v2177, 4
    %v2183 = vadd.f32 %v2177, %v2182
    %v2184 = vrot.slane %v2183, 2
    %v2185 = vadd.f32 %v2183, %v2184
    %v2186 = vrot.slane %v2185, 1
    %v2187 = vadd.f32 %v2185, %v2186
    %v2188 = vrcp.pop 8.0
    %v2189 = vmul.f32 8.0, %v2188
    %v2190 = vsub.f32 1.0, %v2189
    %v2191 = vmul.f32 %v2188, %v2190
    %v2192 = vadd.f32 %v2188, %v2191
    %vm2193 = vweird.f32 %v2188
    %v2194 = vsel %vm2193, %v2188, %v2192
    %v2195 = vmul.f32 %v2187, %v2194
    %2196 = vrot.lane.b32.xlu0 %v2195, 32
    %v2197 = vpop.permute.xlu0 %2196
    %v2198 = vadd.f32 %v2195, %v2197
    %2199 = vrot.lane.b32.xlu0 %v2198, 64
    %v2200 = vpop.permute.xlu0 %2199
    %v2201 = vadd.f32 %v2198, %v2200
    %v2202 = vmul.f32 %v2201, 0.25
    %v2203 = vperm.slane %v2202, 0
    %v2204 = vsub.f32 %v2177, %v2203
    %v2205 = vmul.f32 %v2204, %v2204
    %v2206 = vrot.slane %v2205, 4
    %v2207 = vadd.f32 %v2205, %v2206
    %v2208 = vrot.slane %v2207, 2
    %v2209 = vadd.f32 %v2207, %v2208
    %v2210 = vrot.slane %v2209, 1
    %v2211 = vadd.f32 %v2209, %v2210
    %v2212 = vmul.f32 %v2211, %v2194
    %2213 = vrot.lane.b32.xlu0 %v2212, 32
    %v2214 = vpop.permute.xlu0 %2213
    %v2215 = vadd.f32 %v2212, %v2214
    %2216 = vrot.lane.b32.xlu0 %v2215, 64
    %v2217 = vpop.permute.xlu0 %2216
    %v2218 = vadd.f32 %v2215, %v2217
    %v2219 = vmul.f32 %v2218, 0.25
    %v2220 = vadd.f32 %v2219, 1e-05
    %v2221 = vrsqrt.pop %v2220
    %v2222 = vmul.f32 %v2221, %v2220
    %v2223 = vmul.f32 %v2222, %v2221
    %v2224 = vmul.f32 0.5, %v2223
    %v2225 = vsub.f32 1.5, %v2224
    %v2226 = vmul.f32 %v2221, %v2225
    %vm2227 = vweird.f32 %v2220
    %vm2228 = vweird.f32 %v2221
    %vm2229 = vmor %vm2227, %vm2228
    %v2230 = vsel %vm2229, %v2221, %v2226
    %v2231 = vperm.slane %v2230, 0
    %v2232 = vmul.f32 %v2204, %v2231
    %v2234 = vperm.slane %v2180, 0
    %v2236 = vmul.f32 %v2232, %v2234
    %v2238 = vperm.slane %v2181, 0
    %v2240 = vadd.f32 %v2236, %v2238
    %vm2241 = vcmp.ge.f32.partialorder %v2240, 0.0
    %v2242 = vmul.f32 %v2240, 0.2
    %v2243 = vsel %vm2241, %v2240, %v2242
    %v2244 = vpack.c.bf16 %v2243, %v2243
    %v2246 = vunpack.c.l.b16 %v2244
    %v2247 = vpack.c.b16 %v2246, %v2246
    %v2248 = vrot.slane %v2247, 1
    %v2250 = vrot.slane %v2247, 2
    %v2252 = vrot.slane %v2247, 3
    %v2254 = vld [vmem:[%s11] sm:$0xf]
    %v2255 = vld [vmem:[%s11 + $0x4] sm:$0xf]
    %v2256 = vld [vmem:[%s11 + $0x8] sm:$0xf]
    %v2257 = vld [vmem:[%s11 + $0xc] sm:$0xf]
    %v2258 = vld [vmem:[%s11 + $0x10] sm:$0xf]
    %v2259 = vld [vmem:[%s11 + $0x14] sm:$0xf]
    %v2260 = vld [vmem:[%s11 + $0x18] sm:$0xf]
    %v2261 = vld [vmem:[%s11 + $0x1c] sm:$0xf]
    %v2262 = vld [vmem:[%s11 + $0x20] sm:$0xf]
    %v2263 = vld [vmem:[%s11 + $0x24] sm:$0xf]
    %v2264 = vld [vmem:[%s11 + $0x28] sm:$0xf]
    %v2265 = vld [vmem:[%s11 + $0x2c] sm:$0xf]
    %v2266 = vld [vmem:[%s11 + $0x30] sm:$0xf]
    %v2267 = vld [vmem:[%s11 + $0x34] sm:$0xf]
    %v2268 = vld [vmem:[%s11 + $0x38] sm:$0xf]
    %v2269 = vld [vmem:[%s11 + $0x3c] sm:$0xf]
    %v2270 = vld [vmem:[%s11 + $0x40] sm:$0xf]
    %v2271 = vld [vmem:[%s11 + $0x44] sm:$0xf]
    %v2272 = vld [vmem:[%s11 + $0x48] sm:$0xf]
    %v2273 = vld [vmem:[%s11 + $0x4c] sm:$0xf]
    %v2274 = vld [vmem:[%s11 + $0x50] sm:$0xf]
    %v2275 = vld [vmem:[%s11 + $0x54] sm:$0xf]
    %v2276 = vld [vmem:[%s11 + $0x58] sm:$0xf]
    %v2277 = vld [vmem:[%s11 + $0x5c] sm:$0xf]
    %v2278 = vld [vmem:[%s11 + $0x60] sm:$0xf]
    %v2279 = vld [vmem:[%s11 + $0x64] sm:$0xf]
    %v2280 = vld [vmem:[%s11 + $0x68] sm:$0xf]
    %v2281 = vld [vmem:[%s11 + $0x6c] sm:$0xf]
    %v2282 = vld [vmem:[%s11 + $0x70] sm:$0xf]
    %v2283 = vld [vmem:[%s11 + $0x74] sm:$0xf]
    %v2284 = vld [vmem:[%s11 + $0x78] sm:$0xf]
    %v2285 = vld [vmem:[%s11 + $0x7c] sm:$0xf]
    %v2286 = vld [vmem:[%s11 + $0x80] sm:$0xf]
    %v2287 = vld [vmem:[%s11 + $0x84] sm:$0xf]
    %v2288 = vld [vmem:[%s11 + $0x88] sm:$0xf]
    %v2289 = vld [vmem:[%s11 + $0x8c] sm:$0xf]
    %v2290 = vld [vmem:[%s11 + $0x90] sm:$0xf]
    %v2291 = vld [vmem:[%s11 + $0x94] sm:$0xf]
    %v2292 = vld [vmem:[%s11 + $0x98] sm:$0xf]
    %v2293 = vld [vmem:[%s11 + $0x9c] sm:$0xf]
    %v2294 = vld [vmem:[%s11 + $0xa0] sm:$0xf]
    %v2295 = vld [vmem:[%s11 + $0xa4] sm:$0xf]
    %v2296 = vld [vmem:[%s11 + $0xa8] sm:$0xf]
    %v2297 = vld [vmem:[%s11 + $0xac] sm:$0xf]
    %v2298 = vld [vmem:[%s11 + $0xb0] sm:$0xf]
    %v2299 = vld [vmem:[%s11 + $0xb4] sm:$0xf]
    %v2300 = vld [vmem:[%s11 + $0xb8] sm:$0xf]
    %v2301 = vld [vmem:[%s11 + $0xbc] sm:$0xf]
    %v2302 = vld [vmem:[%s11 + $0xc0] sm:$0xf]
    %v2303 = vld [vmem:[%s11 + $0xc4] sm:$0xf]
    %v2304 = vld [vmem:[%s11 + $0xc8] sm:$0xf]
    %v2305 = vld [vmem:[%s11 + $0xcc] sm:$0xf]
    %v2306 = vld [vmem:[%s11 + $0xd0] sm:$0xf]
    %v2307 = vld [vmem:[%s11 + $0xd4] sm:$0xf]
    %v2308 = vld [vmem:[%s11 + $0xd8] sm:$0xf]
    %v2309 = vld [vmem:[%s11 + $0xdc] sm:$0xf]
    %v2310 = vld [vmem:[%s11 + $0xe0] sm:$0xf]
    %v2311 = vld [vmem:[%s11 + $0xe4] sm:$0xf]
    %v2312 = vld [vmem:[%s11 + $0xe8] sm:$0xf]
    %v2313 = vld [vmem:[%s11 + $0xec] sm:$0xf]
    %v2314 = vld [vmem:[%s11 + $0xf0] sm:$0xf]
    %v2315 = vld [vmem:[%s11 + $0xf4] sm:$0xf]
    %v2316 = vld [vmem:[%s11 + $0xf8] sm:$0xf]
    %v2317 = vld [vmem:[%s11 + $0xfc] sm:$0xf]
    %v2318 = vld [vmem:[#allocation5] sm:$0x1]
    %v2320 = vperm.slane %v2318, 0
    %v2386 = vunpack.c.l.b16 %v2254
    %v2387 = vunpack.c.l.b16 %v2255
    %v2388 = vunpack.c.l.b16 %v2256
    %v2389 = vunpack.c.l.b16 %v2257
    %v2390 = vunpack.c.l.b16 %v2258
    %v2391 = vunpack.c.l.b16 %v2259
    %v2392 = vunpack.c.l.b16 %v2260
    %v2393 = vunpack.c.l.b16 %v2261
    %v2394 = vunpack.c.l.b16 %v2262
    %v2395 = vunpack.c.l.b16 %v2263
    %v2396 = vunpack.c.l.b16 %v2264
    %v2397 = vunpack.c.l.b16 %v2265
    %v2398 = vunpack.c.l.b16 %v2266
    %v2399 = vunpack.c.l.b16 %v2267
    %v2400 = vunpack.c.l.b16 %v2268
    %v2401 = vunpack.c.l.b16 %v2269
    %v2402 = vunpack.c.l.b16 %v2270
    %v2403 = vunpack.c.l.b16 %v2271
    %v2404 = vunpack.c.l.b16 %v2272
    %v2405 = vunpack.c.l.b16 %v2273
    %v2406 = vunpack.c.l.b16 %v2274
    %v2407 = vunpack.c.l.b16 %v2275
    %v2408 = vunpack.c.l.b16 %v2276
    %v2409 = vunpack.c.l.b16 %v2277
    %v2410 = vunpack.c.l.b16 %v2278
    %v2411 = vunpack.c.l.b16 %v2279
    %v2412 = vunpack.c.l.b16 %v2280
    %v2413 = vunpack.c.l.b16 %v2281
    %v2414 = vunpack.c.l.b16 %v2282
    %v2415 = vunpack.c.l.b16 %v2283
    %v2416 = vunpack.c.l.b16 %v2284
    %v2417 = vunpack.c.l.b16 %v2285
    %v2418 = vunpack.c.l.b16 %v2286
    %v2419 = vunpack.c.l.b16 %v2287
    %v2420 = vunpack.c.l.b16 %v2288
    %v2421 = vunpack.c.l.b16 %v2289
    %v2422 = vunpack.c.l.b16 %v2290
    %v2423 = vunpack.c.l.b16 %v2291
    %v2424 = vunpack.c.l.b16 %v2292
    %v2425 = vunpack.c.l.b16 %v2293
    %v2426 = vunpack.c.l.b16 %v2294
    %v2427 = vunpack.c.l.b16 %v2295
    %v2428 = vunpack.c.l.b16 %v2296
    %v2429 = vunpack.c.l.b16 %v2297
    %v2430 = vunpack.c.l.b16 %v2298
    %v2431 = vunpack.c.l.b16 %v2299
    %v2432 = vunpack.c.l.b16 %v2300
    %v2433 = vunpack.c.l.b16 %v2301
    %v2434 = vunpack.c.l.b16 %v2302
    %v2435 = vunpack.c.l.b16 %v2303
    %v2436 = vunpack.c.l.b16 %v2304
    %v2437 = vunpack.c.l.b16 %v2305
    %v2438 = vunpack.c.l.b16 %v2306
    %v2439 = vunpack.c.l.b16 %v2307
    %v2440 = vunpack.c.l.b16 %v2308
    %v2441 = vunpack.c.l.b16 %v2309
    %v2442 = vunpack.c.l.b16 %v2310
    %v2443 = vunpack.c.l.b16 %v2311
    %v2444 = vunpack.c.l.b16 %v2312
    %v2445 = vunpack.c.l.b16 %v2313
    %v2446 = vunpack.c.l.b16 %v2314
    %v2447 = vunpack.c.l.b16 %v2315
    %v2448 = vunpack.c.l.b16 %v2316
    %v2449 = vunpack.c.l.b16 %v2317
    %v2450 = vpack.c.b16 %v2387, %v2386
    %v2451 = vpack.c.b16 %v2389, %v2388
    %v2452 = vpack.c.b16 %v2391, %v2390
    %v2453 = vpack.c.b16 %v2393, %v2392
    %v2454 = vpack.c.b16 %v2395, %v2394
    %v2455 = vpack.c.b16 %v2397, %v2396
    %v2456 = vpack.c.b16 %v2399, %v2398
    %v2457 = vpack.c.b16 %v2401, %v2400
    %v2458 = vpack.c.b16 %v2403, %v2402
    %v2459 = vpack.c.b16 %v2405, %v2404
    %v2460 = vpack.c.b16 %v2407, %v2406
    %v2461 = vpack.c.b16 %v2409, %v2408
    %v2462 = vpack.c.b16 %v2411, %v2410
    %v2463 = vpack.c.b16 %v2413, %v2412
    %v2464 = vpack.c.b16 %v2415, %v2414
    %v2465 = vpack.c.b16 %v2417, %v2416
    %v2466 = vpack.c.b16 %v2419, %v2418
    %v2467 = vpack.c.b16 %v2421, %v2420
    %v2468 = vpack.c.b16 %v2423, %v2422
    %v2469 = vpack.c.b16 %v2425, %v2424
    %v2470 = vpack.c.b16 %v2427, %v2426
    %v2471 = vpack.c.b16 %v2429, %v2428
    %v2472 = vpack.c.b16 %v2431, %v2430
    %v2473 = vpack.c.b16 %v2433, %v2432
    %v2474 = vpack.c.b16 %v2435, %v2434
    %v2475 = vpack.c.b16 %v2437, %v2436
    %v2476 = vpack.c.b16 %v2439, %v2438
    %v2477 = vpack.c.b16 %v2441, %v2440
    %v2478 = vpack.c.b16 %v2443, %v2442
    %v2479 = vpack.c.b16 %v2445, %v2444
    %v2480 = vpack.c.b16 %v2447, %v2446
    %v2481 = vpack.c.b16 %v2449, %v2448
    %2514 = vmatpush.bf16.msra.mxu0 %v2457
    %2515 = vmatpush.bf16.msra.mxu0 %v2456
    %2516 = vmatpush.bf16.msra.mxu0 %v2455
    %2517 = vmatpush.bf16.msra.mxu0 %v2454
    %2518 = vmatpush.bf16.msra.mxu0 %v2453
    %2519 = vmatpush.bf16.msra.mxu0 %v2452
    %2520 = vmatpush.bf16.msra.mxu0 %v2451
    %2521 = vmatpush.bf16.msra.mxu0 %v2450
    %2522 = vmatmul.bf16.gmra.mxu0 %v2244
    %v2523 = vpop.f32.mrf.mxu0
    %v2524 = vadd.f32 %v2320, %v2523
    %v2525 = vpop.f32.mrf.mxu0
    %2526 = vdwg.mxu0
    %2527 = vmatpush.bf16.msra.mxu0 %v2465
    %2528 = vmatpush.bf16.msra.mxu0 %v2464
    %2529 = vmatpush.bf16.msra.mxu0 %v2463
    %2530 = vmatpush.bf16.msra.mxu0 %v2462
    %2531 = vmatpush.bf16.msra.mxu0 %v2461
    %2532 = vmatpush.bf16.msra.mxu0 %v2460
    %2533 = vmatpush.bf16.msra.mxu0 %v2459
    %2534 = vmatpush.bf16.msra.mxu0 %v2458
    %2535 = vmatmul.bf16.gmra.mxu0 %v2248
    %v2536 = vpop.f32.mrf.mxu0
    %v2537 = vadd.f32 %v2524, %v2536
    %v2538 = vpop.f32.mrf.mxu0
    %2539 = vdwg.mxu0
    %2540 = vmatpush.bf16.msra.mxu0 %v2473
    %2541 = vmatpush.bf16.msra.mxu0 %v2472
    %2542 = vmatpush.bf16.msra.mxu0 %v2471
    %2543 = vmatpush.bf16.msra.mxu0 %v2470
    %2544 = vmatpush.bf16.msra.mxu0 %v2469
    %2545 = vmatpush.bf16.msra.mxu0 %v2468
    %2546 = vmatpush.bf16.msra.mxu0 %v2467
    %2547 = vmatpush.bf16.msra.mxu0 %v2466
    %2548 = vmatmul.bf16.gmra.mxu0 %v2250
    %v2549 = vpop.f32.mrf.mxu0
    %v2550 = vadd.f32 %v2537, %v2549
    %v2551 = vpop.f32.mrf.mxu0
    %2552 = vdwg.mxu0
    %2553 = vmatpush.bf16.msra.mxu0 %v2481
    %2554 = vmatpush.bf16.msra.mxu0 %v2480
    %2555 = vmatpush.bf16.msra.mxu0 %v2479
    %2556 = vmatpush.bf16.msra.mxu0 %v2478
    %2557 = vmatpush.bf16.msra.mxu0 %v2477
    %2558 = vmatpush.bf16.msra.mxu0 %v2476
    %2559 = vmatpush.bf16.msra.mxu0 %v2475
    %2560 = vmatpush.bf16.msra.mxu0 %v2474
    %2561 = vmatmul.bf16.gmra.mxu0 %v2252
    %v2562 = vpop.f32.mrf.mxu0
    %v2563 = vadd.f32 %v2550, %v2562
    %v2564 = vpop.f32.mrf.mxu0
    %2565 = vdwg.mxu0
    %v2566 = vxor.u32 %v2563, 2147483648
    %v2567 = vmul.f32 %v2566, 1.442695
    %v2568 = vpow.pop %v2567
    %v2569 = vadd.f32 %v2568, 1.0
    %v2570 = vrcp.pop %v2569
    %v2571 = vmul.f32 %v2569, %v2570
    %v2572 = vsub.f32 1.0, %v2571
    %v2573 = vmul.f32 %v2570, %v2572
    %v2574 = vadd.f32 %v2570, %v2573
    %vm2575 = vweird.f32 %v2569
    %vm2576 = vweird.f32 %v2570
    %vm2577 = vmor %vm2575, %vm2576
    %v2578 = vsel %vm2577, %v2570, %v2574
    %v2579 = vand.u32 2147483647, %v2569
    %vm2580 = vcmp.eq.f32.partialorder %v2579, 8.507059e+37
    %v2581 = vand.u32 %v2569, 2147483648
    %v2582 = vor.u32 1.1754944e-38, %v2581
    %v2583 = vsel %vm2580, %v2582, %v2578
    %v2584 = vmul.f32 1.0, %v2583
    %vm2585 = vcmask 1024
    %2586 = vst.msk [vmem:[%s13] sm:$0x3] %vm2585, %v2584
    // Predicated region
    $region82: #{discriminator_forward.1} parent=1 // pred_check
      _
    $region83: #{discriminator_forward.1} parent=1 // pred_check_branch
      %2588 = sbr.rel (0) target = $region85
    $region84: #{discriminator_forward.1} parent=1 // pred_region
      _
    $region85: #{discriminator_forward.1} parent=1 // pred_fallthru
      _
    // Predicated region
    $region86: #{discriminator_forward.1} parent=1 // pred_check
      _
    $region87: #{discriminator_forward.1} parent=1 // pred_check_branch
      %2590 = sbr.rel (0) target = $region89
    $region88: #{discriminator_forward.1} parent=1 // pred_region
      _
    $region89: #{discriminator_forward.1} parent=1 // pred_fallthru
      _
    %2591 = vsyncpa [#allocation7], 1
    %2592 = vsyncpa [#allocation9], 1
    %2593 = vsyncpa [#allocation12], 1
    %2594 = vsyncpa [#allocation15], 1

</llo_original>
